<compile_context>
chip_gen: v7x
topology: tpu7x:2x2x1
jax: 0.10.0
libtpu: 0.0.40
codegen_flags: <defaults>
</compile_context>

<pallas_src>
import math

import jax
import jax.numpy as jnp
from jax.experimental import pallas as pl
from jax.experimental.pallas import tpu as pltpu

EMBED_DIM = 32
NUM_HEADS = 4
HEAD_DIM = EMBED_DIM // NUM_HEADS
MLP_HIDDEN = int(EMBED_DIM * 4.0)   # 128
LN_EPS = 1e-5

# Matmul operand dtype. Flip to jnp.bfloat16 on v5e/v6e/v7x for ~2x MXU
# throughput (accumulation stays f32 via preferred_element_type); kept at
# float32 here so the kernel matches the float32 PyTorch-module numerics
# within the 2e-3 check below without re-validation.
MATMUL_DTYPE = jnp.float32

# Approximate (EUP) reciprocal in the softmax denominator; set False for an
# exact divide if the acceptance tolerance is ever tightened below ~1e-3.
APPROX_RECIPROCAL = True


def _mm(a, b):
    return jnp.dot(a.astype(MATMUL_DTYPE), b.astype(MATMUL_DTYPE),
                   preferred_element_type=jnp.float32)


def _bmm(eq, a, b):
    return jnp.einsum(eq, a.astype(MATMUL_DTYPE), b.astype(MATMUL_DTYPE),
                      preferred_element_type=jnp.float32)


def _layernorm(x, w, b):
    # PyTorch nn.LayerNorm: biased variance over last dim, eps inside rsqrt.
    mu = jnp.mean(x, axis=-1, keepdims=True)
    xc = x - mu
    var = jnp.mean(xc * xc, axis=-1, keepdims=True)
    return xc * jax.lax.rsqrt(var + LN_EPS) * w + b


def _encoder_layer_kernel(x_ref, wqkv_ref, wo_ref, w1_ref, w2_ref,
                          vec_e_ref, vec_h_ref, o_ref):
    tb, s, e = x_ref.shape
    r = tb * s

    # (TB, S, E) -> (TB*S, E): pure leading-dim collapse, free.
    x = x_ref[...].reshape(r, e)

    # Packed per-feature parameter vectors.
    ln0_w = vec_e_ref[0:1, :]
    ln0_b = vec_e_ref[1:2, :]
    ln1_w = vec_e_ref[2:3, :]
    ln1_b = vec_e_ref[3:4, :]
    ln2_w = vec_e_ref[4:5, :]
    ln2_b = vec_e_ref[5:6, :]
    b_out = vec_e_ref[6:7, :]
    b_mlp2 = vec_e_ref[7:8, :]
    mlp_ln_w = vec_h_ref[0:1, :]
    mlp_ln_b = vec_h_ref[1:2, :]
    b_mlp1 = vec_h_ref[2:3, :]
    b_qkv = vec_h_ref[3:4, :3 * EMBED_DIM]          # (1, 3E), zero-padded row

    # ---- norm0 ----
    h = _layernorm(x, ln0_w, ln0_b)                 # (R, E)

    # ---- multi-head self-attention (1/sqrt(D) pre-folded into W_q / b_q) ----
    qkv = _mm(h, wqkv_ref[...]) + b_qkv             # (R, 3E)
    q = qkv[:, :EMBED_DIM]
    k = qkv[:, EMBED_DIM:2 * EMBED_DIM]
    v = qkv[:, 2 * EMBED_DIM:]

    ctx_heads = []
    for hd in range(NUM_HEADS):                     # static 4-way loop
        sl = slice(hd * HEAD_DIM, (hd + 1) * HEAD_DIM)
        qh = q[:, sl].reshape(tb, s, HEAD_DIM)      # free leading-dim split
        kh = k[:, sl].reshape(tb, s, HEAD_DIM)
        vh = v[:, sl].reshape(tb, s, HEAD_DIM)

        sc = _bmm("bqd,bkd->bqk", qh, kh)           # (TB, S, S)
        sc = sc - jnp.max(sc, axis=-1, keepdims=True)
        p = jnp.exp(sc)
        denom = jnp.sum(p, axis=-1, keepdims=True)
        if APPROX_RECIPROCAL:
            p = p * pl.reciprocal(denom, approx=True)
        else:
            p = p / denom
        ctx_heads.append(_bmm("bqk,bkd->bqd", p, vh))   # (TB, S, D)

    # Heads re-assembled along the lane axis (all 4 * 8 lanes live in one vreg)
    # then projected in a single K=32 matmul with the bias added once.
    ctx = jnp.concatenate(ctx_heads, axis=-1).reshape(r, e)   # (R, E)
    attn = _mm(ctx, wo_ref[...]) + b_out                      # (R, E)

    # ---- norm1(residual + attn); dropout / stochastic depth = identity ----
    x1 = _layernorm(h + attn, ln1_w, ln1_b)

    # ---- MLP: Linear -> LayerNorm -> GELU(exact) -> Linear ----
    m = _mm(x1, w1_ref[...]) + b_mlp1               # (R, MLP_HIDDEN)
    m = _layernorm(m, mlp_ln_w, mlp_ln_b)
    m = 0.5 * m * (1.0 + jax.lax.erf(m * (1.0 / math.sqrt(2.0))))  # exact GELU
    m = _mm(m, w2_ref[...]) + b_mlp2                # (R, E)

    # ---- norm2(residual + mlp) ----
    o_ref[...] = _layernorm(x1 + m, ln2_w, ln2_b).reshape(tb, s, e)


def _pick_block_batch(batch, seq, target_rows=2048):
    """Largest divisor of `batch` with tb*seq <= target_rows, then shrink so the
    grid has >= 4 steps when batch allows (>= 2 per TensorCore on v7x), else
    >= 2 steps when batch >= 2."""
    tb = max(1, min(batch, max(1, target_rows // seq)))
    while batch % tb:
        tb -= 1
    min_steps = 4 if batch >= 4 else (2 if batch >= 2 else 1)
    while tb > 1 and batch // tb < min_steps:
        tb -= 1
        while batch % tb:
            tb -= 1
    return tb


def prepare_weights(params):
    """One-time host-side weight prep (hoisted out of the per-call path):
    folds the 1/sqrt(head_dim) attention scale into the Q columns of the
    in-projection and packs the small per-feature vectors into two VMEM tiles."""
    scale = 1.0 / math.sqrt(HEAD_DIM)
    w_qkv = params["w_qkv"].at[:, :EMBED_DIM].multiply(scale)
    b_qkv = params["b_qkv"].at[:, :EMBED_DIM].multiply(scale)

    vec_e = jnp.concatenate(
        [params["ln0_w"], params["ln0_b"],
         params["ln1_w"], params["ln1_b"],
         params["ln2_w"], params["ln2_b"],
         params["b_out"], params["mlp_b2"]], axis=0)                 # (8, E)
    vec_h = jnp.concatenate(
        [params["mlp_ln_w"], params["mlp_ln_b"], params["mlp_b1"],
         jnp.pad(b_qkv, ((0, 0), (0, MLP_HIDDEN - 3 * EMBED_DIM)))],
        axis=0)                                                      # (4, MLP_HIDDEN)

    return (w_qkv, params["w_out"], params["mlp_w1"], params["mlp_w2"],
            vec_e, vec_h)


def transformer_encoder_layer(x, weights, block_batch=None):
    """x: (B, S, E) float32. weights: tuple from prepare_weights()."""
    B, S, E = x.shape
    assert E == EMBED_DIM
    tb = block_batch if block_batch is not None else _pick_block_batch(B, S)
    assert B % tb == 0

    in_specs = [pl.BlockSpec((tb, S, E), lambda i: (i, 0, 0))]
    # Weights: constant block index keeps them resident across grid steps.
    in_specs += [pl.BlockSpec(w.shape, lambda i: (0, 0)) for w in weights]

    return pl.pallas_call(
        _encoder_layer_kernel,
        out_shape=jax.ShapeDtypeStruct((B, S, E), jnp.float32),
        grid=(B // tb,),
        in_specs=in_specs,
        out_specs=pl.BlockSpec((tb, S, E), lambda i: (i, 0, 0)),
        compiler_params=pltpu.CompilerParams(
            dimension_semantics=("parallel",),
            vmem_limit_bytes=32 * 1024 * 1024),
    )(x, *weights)


def make_params(key):
    """Deterministic parameter init (PyTorch weight layout transposed to (in, out))."""
    ks = jax.random.split(key, 6)
    sd = 0.05
    return {
        # LayerNorm params, stored as (1, dim)
        "ln0_w": jnp.ones((1, EMBED_DIM), jnp.float32),
        "ln0_b": jnp.zeros((1, EMBED_DIM), jnp.float32),
        "ln1_w": jnp.ones((1, EMBED_DIM), jnp.float32),
        "ln1_b": jnp.zeros((1, EMBED_DIM), jnp.float32),
        "ln2_w": jnp.ones((1, EMBED_DIM), jnp.float32),
        "ln2_b": jnp.zeros((1, EMBED_DIM), jnp.float32),
        "mlp_ln_w": jnp.ones((1, MLP_HIDDEN), jnp.float32),
        "mlp_ln_b": jnp.zeros((1, MLP_HIDDEN), jnp.float32),
        # attention in-proj (E, 3E) and out-proj (E, E)
        "w_qkv": sd * jax.random.normal(ks[0], (EMBED_DIM, 3 * EMBED_DIM), jnp.float32),
        "b_qkv": sd * jax.random.normal(ks[1], (1, 3 * EMBED_DIM), jnp.float32),
        "w_out": sd * jax.random.normal(ks[2], (EMBED_DIM, EMBED_DIM), jnp.float32),
        "b_out": jnp.zeros((1, EMBED_DIM), jnp.float32),
        # MLP
        "mlp_w1": sd * jax.random.normal(ks[3], (EMBED_DIM, MLP_HIDDEN), jnp.float32),
        "mlp_b1": sd * jax.random.normal(ks[4], (1, MLP_HIDDEN), jnp.float32),
        "mlp_w2": sd * jax.random.normal(ks[5], (MLP_HIDDEN, EMBED_DIM), jnp.float32),
        "mlp_b2": jnp.zeros((1, EMBED_DIM), jnp.float32),
    }


def reference_forward(x, p):
    """Pure-JAX reference mirroring the PyTorch module (eval mode)."""
    def ln(v, w, b):
        mu = jnp.mean(v, axis=-1, keepdims=True)
        vc = v - mu
        var = jnp.mean(vc * vc, axis=-1, keepdims=True)
        return vc * jax.lax.rsqrt(var + LN_EPS) * w[0] + b[0]

    B, S, E = x.shape
    h = ln(x, p["ln0_w"], p["ln0_b"])
    qkv = h @ p["w_qkv"] + p["b_qkv"][0]
    q, k, v = jnp.split(qkv, 3, axis=-1)
    q = q.reshape(B, S, NUM_HEADS, HEAD_DIM)
    k = k.reshape(B, S, NUM_HEADS, HEAD_DIM)
    v = v.reshape(B, S, NUM_HEADS, HEAD_DIM)
    s = jnp.einsum("bqhd,bkhd->bhqk", q, k) / math.sqrt(HEAD_DIM)
    a = jax.nn.softmax(s, axis=-1)
    attn = jnp.einsum("bhqk,bkhd->bqhd", a, v).reshape(B, S, E)
    attn = attn @ p["w_out"] + p["b_out"][0]
    x1 = ln(h + attn, p["ln1_w"], p["ln1_b"])
    m = x1 @ p["mlp_w1"] + p["mlp_b1"][0]
    m = ln(m, p["mlp_ln_w"], p["mlp_ln_b"])
    m = jax.nn.gelu(m, approximate=False)
    m = m @ p["mlp_w2"] + p["mlp_b2"][0]
    return ln(x1 + m, p["ln2_w"], p["ln2_b"])


if __name__ == "__main__":
    key = jax.random.PRNGKey(0)
    kx, kp, kx2 = jax.random.split(key, 3)
    params = make_params(kp)
    weights = prepare_weights(params)   # host-side prep, done once

    # Small demo shape (B=2, S=8, E=32) -> block_batch=1, grid=(2,).
    B, S = 2, 8
    x = jax.random.normal(kx, (B, S, EMBED_DIM), jnp.float32)
    out = jax.block_until_ready(transformer_encoder_layer(x, weights))
    ref = reference_forward(x, params)
    assert out.shape == (B, S, EMBED_DIM)
    assert jnp.allclose(out, ref, rtol=2e-3, atol=2e-3), (
        f"max abs err {float(jnp.max(jnp.abs(out - ref)))}")

    # Exercise the multi-batch block / multi-step grid path (tb=2, grid=(4,)).
    B2 = 8
    x2 = jax.random.normal(kx2, (B2, S, EMBED_DIM), jnp.float32)
    out2 = jax.block_until_ready(transformer_encoder_layer(x2, weights))
    ref2 = reference_forward(x2, params)
    assert jnp.allclose(out2, ref2, rtol=2e-3, atol=2e-3), (
        f"max abs err {float(jnp.max(jnp.abs(out2 - ref2)))}")

    print("KERNEL_OK")
</pallas_src>

<mosaic_0001>
module attributes {stable_mosaic.version = 11 : i64} {
  func.func @_encoder_layer_kernel(%arg0: i32, %arg1: memref<1x8x32xf32, #tpu.memory_space<vmem>>, %arg2: memref<32x96xf32, #tpu.memory_space<vmem>>, %arg3: memref<32x32xf32, #tpu.memory_space<vmem>>, %arg4: memref<32x128xf32, #tpu.memory_space<vmem>>, %arg5: memref<128x32xf32, #tpu.memory_space<vmem>>, %arg6: memref<8x32xf32, #tpu.memory_space<vmem>>, %arg7: memref<4x128xf32, #tpu.memory_space<vmem>>, %arg8: memref<1x8x32xf32, #tpu.memory_space<vmem>>) attributes {dimension_semantics = [#tpu.dimension_semantics<parallel>], iteration_bounds = array<i64: 2>, scalar_prefetch = 0 : i64, scratch_operands = 0 : i64, tpu.core_type = #tpu.core_type<tc>, window_params = [{transform_indices = @transform_0, window_bounds = array<i64: 1, 8, 32>}, {pipeline_mode = #tpu.pipeline_mode<synchronous>, transform_indices = @transform_1, window_bounds = array<i64: 32, 96>}, {pipeline_mode = #tpu.pipeline_mode<synchronous>, transform_indices = @transform_2, window_bounds = array<i64: 32, 32>}, {pipeline_mode = #tpu.pipeline_mode<synchronous>, transform_indices = @transform_3, window_bounds = array<i64: 32, 128>}, {pipeline_mode = #tpu.pipeline_mode<synchronous>, transform_indices = @transform_4, window_bounds = array<i64: 128, 32>}, {pipeline_mode = #tpu.pipeline_mode<synchronous>, transform_indices = @transform_5, window_bounds = array<i64: 8, 32>}, {pipeline_mode = #tpu.pipeline_mode<synchronous>, transform_indices = @transform_6, window_bounds = array<i64: 4, 128>}, {transform_indices = @transform_7, window_bounds = array<i64: 1, 8, 32>}]} {
    %c0 = arith.constant 0 : index
    %c0_0 = arith.constant 0 : index
    %c0_1 = arith.constant 0 : index
    %0 = vector.load %arg1[%c0, %c0_0, %c0_1] : memref<1x8x32xf32, #tpu.memory_space<vmem>>, vector<1x8x32xf32>
    %1 = vector.shape_cast %0 : vector<1x8x32xf32> to vector<8x32xf32>
    %c0_2 = arith.constant 0 : index
    %c0_3 = arith.constant 0 : index
    %2 = vector.load %arg6[%c0_2, %c0_3] : memref<8x32xf32, #tpu.memory_space<vmem>>, vector<1x32xf32>
    %c1 = arith.constant 1 : index
    %c0_4 = arith.constant 0 : index
    %3 = vector.load %arg6[%c1, %c0_4] : memref<8x32xf32, #tpu.memory_space<vmem>>, vector<1x32xf32>
    %c2 = arith.constant 2 : index
    %c0_5 = arith.constant 0 : index
    %4 = vector.load %arg6[%c2, %c0_5] : memref<8x32xf32, #tpu.memory_space<vmem>>, vector<1x32xf32>
    %c3 = arith.constant 3 : index
    %c0_6 = arith.constant 0 : index
    %5 = vector.load %arg6[%c3, %c0_6] : memref<8x32xf32, #tpu.memory_space<vmem>>, vector<1x32xf32>
    %c4 = arith.constant 4 : index
    %c0_7 = arith.constant 0 : index
    %6 = vector.load %arg6[%c4, %c0_7] : memref<8x32xf32, #tpu.memory_space<vmem>>, vector<1x32xf32>
    %c5 = arith.constant 5 : index
    %c0_8 = arith.constant 0 : index
    %7 = vector.load %arg6[%c5, %c0_8] : memref<8x32xf32, #tpu.memory_space<vmem>>, vector<1x32xf32>
    %c6 = arith.constant 6 : index
    %c0_9 = arith.constant 0 : index
    %8 = vector.load %arg6[%c6, %c0_9] : memref<8x32xf32, #tpu.memory_space<vmem>>, vector<1x32xf32>
    %c7 = arith.constant 7 : index
    %c0_10 = arith.constant 0 : index
    %9 = vector.load %arg6[%c7, %c0_10] : memref<8x32xf32, #tpu.memory_space<vmem>>, vector<1x32xf32>
    %c0_11 = arith.constant 0 : index
    %c0_12 = arith.constant 0 : index
    %10 = vector.load %arg7[%c0_11, %c0_12] : memref<4x128xf32, #tpu.memory_space<vmem>>, vector<1x128xf32>
    %c1_13 = arith.constant 1 : index
    %c0_14 = arith.constant 0 : index
    %11 = vector.load %arg7[%c1_13, %c0_14] : memref<4x128xf32, #tpu.memory_space<vmem>>, vector<1x128xf32>
    %c2_15 = arith.constant 2 : index
    %c0_16 = arith.constant 0 : index
    %12 = vector.load %arg7[%c2_15, %c0_16] : memref<4x128xf32, #tpu.memory_space<vmem>>, vector<1x128xf32>
    %c3_17 = arith.constant 3 : index
    %c0_18 = arith.constant 0 : index
    %13 = vector.load %arg7[%c3_17, %c0_18] : memref<4x128xf32, #tpu.memory_space<vmem>>, vector<1x96xf32>
    %cst = arith.constant dense<0.000000e+00> : vector<8xf32>
    %14 = vector.multi_reduction <add>, %1, %cst [1] : vector<8x32xf32> to vector<8xf32>
    %15 = vector.shape_cast %14 : vector<8xf32> to vector<8x1xf32>
    %cst_19 = arith.constant 3.200000e+01 : f32
    %16 = vector.broadcast %cst_19 : f32 to vector<8x1xf32>
    %17 = arith.divf %15, %16 : vector<8x1xf32>
    %18 = vector.broadcast %17 : vector<8x1xf32> to vector<8x32xf32>
    %19 = arith.subf %1, %18 : vector<8x32xf32>
    %20 = arith.mulf %19, %19 : vector<8x32xf32>
    %cst_20 = arith.constant dense<0.000000e+00> : vector<8xf32>
    %21 = vector.multi_reduction <add>, %20, %cst_20 [1] : vector<8x32xf32> to vector<8xf32>
    %22 = vector.shape_cast %21 : vector<8xf32> to vector<8x1xf32>
    %cst_21 = arith.constant 3.200000e+01 : f32
    %23 = vector.broadcast %cst_21 : f32 to vector<8x1xf32>
    %24 = arith.divf %22, %23 : vector<8x1xf32>
    %cst_22 = arith.constant 9.99999974E-6 : f32
    %25 = vector.broadcast %cst_22 : f32 to vector<8x1xf32>
    %26 = arith.addf %24, %25 : vector<8x1xf32>
    %27 = math.rsqrt %26 : vector<8x1xf32>
    %28 = vector.broadcast %27 : vector<8x1xf32> to vector<8x32xf32>
    %29 = arith.mulf %19, %28 : vector<8x32xf32>
    %30 = vector.broadcast %2 : vector<1x32xf32> to vector<8x32xf32>
    %31 = arith.mulf %29, %30 : vector<8x32xf32>
    %32 = vector.broadcast %3 : vector<1x32xf32> to vector<8x32xf32>
    %33 = arith.addf %31, %32 : vector<8x32xf32>
    %c0_23 = arith.constant 0 : index
    %c0_24 = arith.constant 0 : index
    %34 = vector.load %arg2[%c0_23, %c0_24] : memref<32x96xf32, #tpu.memory_space<vmem>>, vector<32x96xf32>
    %cst_25 = arith.constant dense<0.000000e+00> : vector<8x96xf32>
    %35 = tpu.matmul %33, %34, %cst_25 {dimension_numbers = #tpu.dot_dimension_numbers<[1], [0], [0], [1], [0, 0, 1, 1], [], []>} : vector<8x32xf32>, vector<32x96xf32>, vector<8x96xf32> -> vector<8x96xf32>
    %36 = vector.broadcast %13 : vector<1x96xf32> to vector<8x96xf32>
    %37 = arith.addf %35, %36 : vector<8x96xf32>
    %38 = vector.extract_strided_slice %37 {offsets = [0, 0], sizes = [8, 32], strides = [1, 1]} : vector<8x96xf32> to vector<8x32xf32>
    %39 = vector.extract_strided_slice %37 {offsets = [0, 32], sizes = [8, 32], strides = [1, 1]} : vector<8x96xf32> to vector<8x32xf32>
    %40 = vector.extract_strided_slice %37 {offsets = [0, 64], sizes = [8, 32], strides = [1, 1]} : vector<8x96xf32> to vector<8x32xf32>
    %41 = vector.extract_strided_slice %38 {offsets = [0, 0], sizes = [8, 8], strides = [1, 1]} : vector<8x32xf32> to vector<8x8xf32>
    %42 = vector.shape_cast %41 : vector<8x8xf32> to vector<1x8x8xf32>
    %43 = vector.extract_strided_slice %39 {offsets = [0, 0], sizes = [8, 8], strides = [1, 1]} : vector<8x32xf32> to vector<8x8xf32>
    %44 = vector.shape_cast %43 : vector<8x8xf32> to vector<1x8x8xf32>
    %45 = vector.extract_strided_slice %40 {offsets = [0, 0], sizes = [8, 8], strides = [1, 1]} : vector<8x32xf32> to vector<8x8xf32>
    %46 = vector.shape_cast %45 : vector<8x8xf32> to vector<1x8x8xf32>
    "tpu.trace_start"() <{level = 10 : i32, message = "bqd,bkd->bqk"}> : () -> ()
    %cst_26 = arith.constant dense<0.000000e+00> : vector<1x8x8xf32>
    %47 = tpu.matmul %42, %44, %cst_26 {dimension_numbers = #tpu.dot_dimension_numbers<[2], [2], [1], [1], [0, 0, 0, 1, 1, 1], [0], [0]>} : vector<1x8x8xf32>, vector<1x8x8xf32>, vector<1x8x8xf32> -> vector<1x8x8xf32>
    "tpu.trace_stop"() : () -> ()
    %cst_27 = arith.constant dense<0xFF800000> : vector<1x8xf32>
    %48 = vector.multi_reduction <maximumf>, %47, %cst_27 [2] : vector<1x8x8xf32> to vector<1x8xf32>
    %49 = vector.shape_cast %48 : vector<1x8xf32> to vector<1x8x1xf32>
    %50 = vector.broadcast %49 : vector<1x8x1xf32> to vector<1x8x8xf32>
    %51 = arith.subf %47, %50 : vector<1x8x8xf32>
    %52 = math.exp %51 : vector<1x8x8xf32>
    %cst_28 = arith.constant dense<0.000000e+00> : vector<1x8xf32>
    %53 = vector.multi_reduction <add>, %52, %cst_28 [2] : vector<1x8x8xf32> to vector<1x8xf32>
    %54 = vector.shape_cast %53 : vector<1x8xf32> to vector<1x8x1xf32>
    %55 = tpu.reciprocal %54 {approx = true} : vector<1x8x1xf32> -> vector<1x8x1xf32>
    %56 = vector.broadcast %55 : vector<1x8x1xf32> to vector<1x8x8xf32>
    %57 = arith.mulf %52, %56 : vector<1x8x8xf32>
    "tpu.trace_start"() <{level = 10 : i32, message = "bqk,bkd->bqd"}> : () -> ()
    %cst_29 = arith.constant dense<0.000000e+00> : vector<1x8x8xf32>
    %58 = tpu.matmul %57, %46, %cst_29 {dimension_numbers = #tpu.dot_dimension_numbers<[2], [1], [1], [2], [0, 0, 0, 1, 1, 2], [0], [0]>} : vector<1x8x8xf32>, vector<1x8x8xf32>, vector<1x8x8xf32> -> vector<1x8x8xf32>
    "tpu.trace_stop"() : () -> ()
    %59 = vector.extract_strided_slice %38 {offsets = [0, 8], sizes = [8, 8], strides = [1, 1]} : vector<8x32xf32> to vector<8x8xf32>
    %60 = vector.shape_cast %59 : vector<8x8xf32> to vector<1x8x8xf32>
    %61 = vector.extract_strided_slice %39 {offsets = [0, 8], sizes = [8, 8], strides = [1, 1]} : vector<8x32xf32> to vector<8x8xf32>
    %62 = vector.shape_cast %61 : vector<8x8xf32> to vector<1x8x8xf32>
    %63 = vector.extract_strided_slice %40 {offsets = [0, 8], sizes = [8, 8], strides = [1, 1]} : vector<8x32xf32> to vector<8x8xf32>
    %64 = vector.shape_cast %63 : vector<8x8xf32> to vector<1x8x8xf32>
    "tpu.trace_start"() <{level = 10 : i32, message = "bqd,bkd->bqk"}> : () -> ()
    %cst_30 = arith.constant dense<0.000000e+00> : vector<1x8x8xf32>
    %65 = tpu.matmul %60, %62, %cst_30 {dimension_numbers = #tpu.dot_dimension_numbers<[2], [2], [1], [1], [0, 0, 0, 1, 1, 1], [0], [0]>} : vector<1x8x8xf32>, vector<1x8x8xf32>, vector<1x8x8xf32> -> vector<1x8x8xf32>
    "tpu.trace_stop"() : () -> ()
    %cst_31 = arith.constant dense<0xFF800000> : vector<1x8xf32>
    %66 = vector.multi_reduction <maximumf>, %65, %cst_31 [2] : vector<1x8x8xf32> to vector<1x8xf32>
    %67 = vector.shape_cast %66 : vector<1x8xf32> to vector<1x8x1xf32>
    %68 = vector.broadcast %67 : vector<1x8x1xf32> to vector<1x8x8xf32>
    %69 = arith.subf %65, %68 : vector<1x8x8xf32>
    %70 = math.exp %69 : vector<1x8x8xf32>
    %cst_32 = arith.constant dense<0.000000e+00> : vector<1x8xf32>
    %71 = vector.multi_reduction <add>, %70, %cst_32 [2] : vector<1x8x8xf32> to vector<1x8xf32>
    %72 = vector.shape_cast %71 : vector<1x8xf32> to vector<1x8x1xf32>
    %73 = tpu.reciprocal %72 {approx = true} : vector<1x8x1xf32> -> vector<1x8x1xf32>
    %74 = vector.broadcast %73 : vector<1x8x1xf32> to vector<1x8x8xf32>
    %75 = arith.mulf %70, %74 : vector<1x8x8xf32>
    "tpu.trace_start"() <{level = 10 : i32, message = "bqk,bkd->bqd"}> : () -> ()
    %cst_33 = arith.constant dense<0.000000e+00> : vector<1x8x8xf32>
    %76 = tpu.matmul %75, %64, %cst_33 {dimension_numbers = #tpu.dot_dimension_numbers<[2], [1], [1], [2], [0, 0, 0, 1, 1, 2], [0], [0]>} : vector<1x8x8xf32>, vector<1x8x8xf32>, vector<1x8x8xf32> -> vector<1x8x8xf32>
    "tpu.trace_stop"() : () -> ()
    %77 = vector.extract_strided_slice %38 {offsets = [0, 16], sizes = [8, 8], strides = [1, 1]} : vector<8x32xf32> to vector<8x8xf32>
    %78 = vector.shape_cast %77 : vector<8x8xf32> to vector<1x8x8xf32>
    %79 = vector.extract_strided_slice %39 {offsets = [0, 16], sizes = [8, 8], strides = [1, 1]} : vector<8x32xf32> to vector<8x8xf32>
    %80 = vector.shape_cast %79 : vector<8x8xf32> to vector<1x8x8xf32>
    %81 = vector.extract_strided_slice %40 {offsets = [0, 16], sizes = [8, 8], strides = [1, 1]} : vector<8x32xf32> to vector<8x8xf32>
    %82 = vector.shape_cast %81 : vector<8x8xf32> to vector<1x8x8xf32>
    "tpu.trace_start"() <{level = 10 : i32, message = "bqd,bkd->bqk"}> : () -> ()
    %cst_34 = arith.constant dense<0.000000e+00> : vector<1x8x8xf32>
    %83 = tpu.matmul %78, %80, %cst_34 {dimension_numbers = #tpu.dot_dimension_numbers<[2], [2], [1], [1], [0, 0, 0, 1, 1, 1], [0], [0]>} : vector<1x8x8xf32>, vector<1x8x8xf32>, vector<1x8x8xf32> -> vector<1x8x8xf32>
    "tpu.trace_stop"() : () -> ()
    %cst_35 = arith.constant dense<0xFF800000> : vector<1x8xf32>
    %84 = vector.multi_reduction <maximumf>, %83, %cst_35 [2] : vector<1x8x8xf32> to vector<1x8xf32>
    %85 = vector.shape_cast %84 : vector<1x8xf32> to vector<1x8x1xf32>
    %86 = vector.broadcast %85 : vector<1x8x1xf32> to vector<1x8x8xf32>
    %87 = arith.subf %83, %86 : vector<1x8x8xf32>
    %88 = math.exp %87 : vector<1x8x8xf32>
    %cst_36 = arith.constant dense<0.000000e+00> : vector<1x8xf32>
    %89 = vector.multi_reduction <add>, %88, %cst_36 [2] : vector<1x8x8xf32> to vector<1x8xf32>
    %90 = vector.shape_cast %89 : vector<1x8xf32> to vector<1x8x1xf32>
    %91 = tpu.reciprocal %90 {approx = true} : vector<1x8x1xf32> -> vector<1x8x1xf32>
    %92 = vector.broadcast %91 : vector<1x8x1xf32> to vector<1x8x8xf32>
    %93 = arith.mulf %88, %92 : vector<1x8x8xf32>
    "tpu.trace_start"() <{level = 10 : i32, message = "bqk,bkd->bqd"}> : () -> ()
    %cst_37 = arith.constant dense<0.000000e+00> : vector<1x8x8xf32>
    %94 = tpu.matmul %93, %82, %cst_37 {dimension_numbers = #tpu.dot_dimension_numbers<[2], [1], [1], [2], [0, 0, 0, 1, 1, 2], [0], [0]>} : vector<1x8x8xf32>, vector<1x8x8xf32>, vector<1x8x8xf32> -> vector<1x8x8xf32>
    "tpu.trace_stop"() : () -> ()
    %95 = vector.extract_strided_slice %38 {offsets = [0, 24], sizes = [8, 8], strides = [1, 1]} : vector<8x32xf32> to vector<8x8xf32>
    %96 = vector.shape_cast %95 : vector<8x8xf32> to vector<1x8x8xf32>
    %97 = vector.extract_strided_slice %39 {offsets = [0, 24], sizes = [8, 8], strides = [1, 1]} : vector<8x32xf32> to vector<8x8xf32>
    %98 = vector.shape_cast %97 : vector<8x8xf32> to vector<1x8x8xf32>
    %99 = vector.extract_strided_slice %40 {offsets = [0, 24], sizes = [8, 8], strides = [1, 1]} : vector<8x32xf32> to vector<8x8xf32>
    %100 = vector.shape_cast %99 : vector<8x8xf32> to vector<1x8x8xf32>
    "tpu.trace_start"() <{level = 10 : i32, message = "bqd,bkd->bqk"}> : () -> ()
    %cst_38 = arith.constant dense<0.000000e+00> : vector<1x8x8xf32>
    %101 = tpu.matmul %96, %98, %cst_38 {dimension_numbers = #tpu.dot_dimension_numbers<[2], [2], [1], [1], [0, 0, 0, 1, 1, 1], [0], [0]>} : vector<1x8x8xf32>, vector<1x8x8xf32>, vector<1x8x8xf32> -> vector<1x8x8xf32>
    "tpu.trace_stop"() : () -> ()
    %cst_39 = arith.constant dense<0xFF800000> : vector<1x8xf32>
    %102 = vector.multi_reduction <maximumf>, %101, %cst_39 [2] : vector<1x8x8xf32> to vector<1x8xf32>
    %103 = vector.shape_cast %102 : vector<1x8xf32> to vector<1x8x1xf32>
    %104 = vector.broadcast %103 : vector<1x8x1xf32> to vector<1x8x8xf32>
    %105 = arith.subf %101, %104 : vector<1x8x8xf32>
    %106 = math.exp %105 : vector<1x8x8xf32>
    %cst_40 = arith.constant dense<0.000000e+00> : vector<1x8xf32>
    %107 = vector.multi_reduction <add>, %106, %cst_40 [2] : vector<1x8x8xf32> to vector<1x8xf32>
    %108 = vector.shape_cast %107 : vector<1x8xf32> to vector<1x8x1xf32>
    %109 = tpu.reciprocal %108 {approx = true} : vector<1x8x1xf32> -> vector<1x8x1xf32>
    %110 = vector.broadcast %109 : vector<1x8x1xf32> to vector<1x8x8xf32>
    %111 = arith.mulf %106, %110 : vector<1x8x8xf32>
    "tpu.trace_start"() <{level = 10 : i32, message = "bqk,bkd->bqd"}> : () -> ()
    %cst_41 = arith.constant dense<0.000000e+00> : vector<1x8x8xf32>
    %112 = tpu.matmul %111, %100, %cst_41 {dimension_numbers = #tpu.dot_dimension_numbers<[2], [1], [1], [2], [0, 0, 0, 1, 1, 2], [0], [0]>} : vector<1x8x8xf32>, vector<1x8x8xf32>, vector<1x8x8xf32> -> vector<1x8x8xf32>
    "tpu.trace_stop"() : () -> ()
    %113 = tpu.concatenate %58, %76, %94, %112 in 2 : vector<1x8x8xf32>, vector<1x8x8xf32>, vector<1x8x8xf32>, vector<1x8x8xf32> -> vector<1x8x32xf32>
    %114 = vector.shape_cast %113 : vector<1x8x32xf32> to vector<8x32xf32>
    %c0_42 = arith.constant 0 : index
    %c0_43 = arith.constant 0 : index
    %115 = vector.load %arg3[%c0_42, %c0_43] : memref<32x32xf32, #tpu.memory_space<vmem>>, vector<32x32xf32>
    %cst_44 = arith.constant dense<0.000000e+00> : vector<8x32xf32>
    %116 = tpu.matmul %114, %115, %cst_44 {dimension_numbers = #tpu.dot_dimension_numbers<[1], [0], [0], [1], [0, 0, 1, 1], [], []>} : vector<8x32xf32>, vector<32x32xf32>, vector<8x32xf32> -> vector<8x32xf32>
    %117 = vector.broadcast %8 : vector<1x32xf32> to vector<8x32xf32>
    %118 = arith.addf %116, %117 : vector<8x32xf32>
    %119 = arith.addf %33, %118 : vector<8x32xf32>
    %cst_45 = arith.constant dense<0.000000e+00> : vector<8xf32>
    %120 = vector.multi_reduction <add>, %119, %cst_45 [1] : vector<8x32xf32> to vector<8xf32>
    %121 = vector.shape_cast %120 : vector<8xf32> to vector<8x1xf32>
    %cst_46 = arith.constant 3.200000e+01 : f32
    %122 = vector.broadcast %cst_46 : f32 to vector<8x1xf32>
    %123 = arith.divf %121, %122 : vector<8x1xf32>
    %124 = vector.broadcast %123 : vector<8x1xf32> to vector<8x32xf32>
    %125 = arith.subf %119, %124 : vector<8x32xf32>
    %126 = arith.mulf %125, %125 : vector<8x32xf32>
    %cst_47 = arith.constant dense<0.000000e+00> : vector<8xf32>
    %127 = vector.multi_reduction <add>, %126, %cst_47 [1] : vector<8x32xf32> to vector<8xf32>
    %128 = vector.shape_cast %127 : vector<8xf32> to vector<8x1xf32>
    %cst_48 = arith.constant 3.200000e+01 : f32
    %129 = vector.broadcast %cst_48 : f32 to vector<8x1xf32>
    %130 = arith.divf %128, %129 : vector<8x1xf32>
    %cst_49 = arith.constant 9.99999974E-6 : f32
    %131 = vector.broadcast %cst_49 : f32 to vector<8x1xf32>
    %132 = arith.addf %130, %131 : vector<8x1xf32>
    %133 = math.rsqrt %132 : vector<8x1xf32>
    %134 = vector.broadcast %133 : vector<8x1xf32> to vector<8x32xf32>
    %135 = arith.mulf %125, %134 : vector<8x32xf32>
    %136 = vector.broadcast %4 : vector<1x32xf32> to vector<8x32xf32>
    %137 = arith.mulf %135, %136 : vector<8x32xf32>
    %138 = vector.broadcast %5 : vector<1x32xf32> to vector<8x32xf32>
    %139 = arith.addf %137, %138 : vector<8x32xf32>
    %c0_50 = arith.constant 0 : index
    %c0_51 = arith.constant 0 : index
    %140 = vector.load %arg4[%c0_50, %c0_51] : memref<32x128xf32, #tpu.memory_space<vmem>>, vector<32x128xf32>
    %cst_52 = arith.constant dense<0.000000e+00> : vector<8x128xf32>
    %141 = tpu.matmul %139, %140, %cst_52 {dimension_numbers = #tpu.dot_dimension_numbers<[1], [0], [0], [1], [0, 0, 1, 1], [], []>} : vector<8x32xf32>, vector<32x128xf32>, vector<8x128xf32> -> vector<8x128xf32>
    %142 = vector.broadcast %12 : vector<1x128xf32> to vector<8x128xf32>
    %143 = arith.addf %141, %142 : vector<8x128xf32>
    %cst_53 = arith.constant dense<0.000000e+00> : vector<8xf32>
    %144 = vector.multi_reduction <add>, %143, %cst_53 [1] : vector<8x128xf32> to vector<8xf32>
    %145 = vector.shape_cast %144 : vector<8xf32> to vector<8x1xf32>
    %cst_54 = arith.constant 1.280000e+02 : f32
    %146 = vector.broadcast %cst_54 : f32 to vector<8x1xf32>
    %147 = arith.divf %145, %146 : vector<8x1xf32>
    %148 = vector.broadcast %147 : vector<8x1xf32> to vector<8x128xf32>
    %149 = arith.subf %143, %148 : vector<8x128xf32>
    %150 = arith.mulf %149, %149 : vector<8x128xf32>
    %cst_55 = arith.constant dense<0.000000e+00> : vector<8xf32>
    %151 = vector.multi_reduction <add>, %150, %cst_55 [1] : vector<8x128xf32> to vector<8xf32>
    %152 = vector.shape_cast %151 : vector<8xf32> to vector<8x1xf32>
    %cst_56 = arith.constant 1.280000e+02 : f32
    %153 = vector.broadcast %cst_56 : f32 to vector<8x1xf32>
    %154 = arith.divf %152, %153 : vector<8x1xf32>
    %cst_57 = arith.constant 9.99999974E-6 : f32
    %155 = vector.broadcast %cst_57 : f32 to vector<8x1xf32>
    %156 = arith.addf %154, %155 : vector<8x1xf32>
    %157 = math.rsqrt %156 : vector<8x1xf32>
    %158 = vector.broadcast %157 : vector<8x1xf32> to vector<8x128xf32>
    %159 = arith.mulf %149, %158 : vector<8x128xf32>
    %160 = vector.broadcast %10 : vector<1x128xf32> to vector<8x128xf32>
    %161 = arith.mulf %159, %160 : vector<8x128xf32>
    %162 = vector.broadcast %11 : vector<1x128xf32> to vector<8x128xf32>
    %163 = arith.addf %161, %162 : vector<8x128xf32>
    %cst_58 = arith.constant 5.000000e-01 : f32
    %164 = vector.broadcast %cst_58 : f32 to vector<8x128xf32>
    %165 = arith.mulf %164, %163 : vector<8x128xf32>
    %cst_59 = arith.constant 0.707106769 : f32
    %166 = vector.broadcast %cst_59 : f32 to vector<8x128xf32>
    %167 = arith.mulf %163, %166 : vector<8x128xf32>
    %168 = math.erf %167 : vector<8x128xf32>
    %cst_60 = arith.constant 1.000000e+00 : f32
    %169 = vector.broadcast %cst_60 : f32 to vector<8x128xf32>
    %170 = arith.addf %169, %168 : vector<8x128xf32>
    %171 = arith.mulf %165, %170 : vector<8x128xf32>
    %c0_61 = arith.constant 0 : index
    %c0_62 = arith.constant 0 : index
    %172 = vector.load %arg5[%c0_61, %c0_62] : memref<128x32xf32, #tpu.memory_space<vmem>>, vector<128x32xf32>
    %cst_63 = arith.constant dense<0.000000e+00> : vector<8x32xf32>
    %173 = tpu.matmul %171, %172, %cst_63 {dimension_numbers = #tpu.dot_dimension_numbers<[1], [0], [0], [1], [0, 0, 1, 1], [], []>} : vector<8x128xf32>, vector<128x32xf32>, vector<8x32xf32> -> vector<8x32xf32>
    %174 = vector.broadcast %9 : vector<1x32xf32> to vector<8x32xf32>
    %175 = arith.addf %173, %174 : vector<8x32xf32>
    %176 = arith.addf %139, %175 : vector<8x32xf32>
    %cst_64 = arith.constant dense<0.000000e+00> : vector<8xf32>
    %177 = vector.multi_reduction <add>, %176, %cst_64 [1] : vector<8x32xf32> to vector<8xf32>
    %178 = vector.shape_cast %177 : vector<8xf32> to vector<8x1xf32>
    %cst_65 = arith.constant 3.200000e+01 : f32
    %179 = vector.broadcast %cst_65 : f32 to vector<8x1xf32>
    %180 = arith.divf %178, %179 : vector<8x1xf32>
    %181 = vector.broadcast %180 : vector<8x1xf32> to vector<8x32xf32>
    %182 = arith.subf %176, %181 : vector<8x32xf32>
    %183 = arith.mulf %182, %182 : vector<8x32xf32>
    %cst_66 = arith.constant dense<0.000000e+00> : vector<8xf32>
    %184 = vector.multi_reduction <add>, %183, %cst_66 [1] : vector<8x32xf32> to vector<8xf32>
    %185 = vector.shape_cast %184 : vector<8xf32> to vector<8x1xf32>
    %cst_67 = arith.constant 3.200000e+01 : f32
    %186 = vector.broadcast %cst_67 : f32 to vector<8x1xf32>
    %187 = arith.divf %185, %186 : vector<8x1xf32>
    %cst_68 = arith.constant 9.99999974E-6 : f32
    %188 = vector.broadcast %cst_68 : f32 to vector<8x1xf32>
    %189 = arith.addf %187, %188 : vector<8x1xf32>
    %190 = math.rsqrt %189 : vector<8x1xf32>
    %191 = vector.broadcast %190 : vector<8x1xf32> to vector<8x32xf32>
    %192 = arith.mulf %182, %191 : vector<8x32xf32>
    %193 = vector.broadcast %6 : vector<1x32xf32> to vector<8x32xf32>
    %194 = arith.mulf %192, %193 : vector<8x32xf32>
    %195 = vector.broadcast %7 : vector<1x32xf32> to vector<8x32xf32>
    %196 = arith.addf %194, %195 : vector<8x32xf32>
    %197 = vector.shape_cast %196 : vector<8x32xf32> to vector<1x8x32xf32>
    %c0_69 = arith.constant 0 : index
    %c0_70 = arith.constant 0 : index
    %c0_71 = arith.constant 0 : index
    %198 = vector.load %arg8[%c0_69, %c0_70, %c0_71] : memref<1x8x32xf32, #tpu.memory_space<vmem>>, vector<1x8x32xf32>
    tpu.vector_store %arg8[%c0_69, %c0_70, %c0_71], %197 {strides = array<i32>} : memref<1x8x32xf32, #tpu.memory_space<vmem>>, vector<1x8x32xf32>,
    return
  }
  func.func @transform_0(%arg0: i32) -> (i32, i32, i32) {
    %c0_i32 = arith.constant 0 : i32
    %c0_i32_0 = arith.constant 0 : i32
    %c0_i32_1 = arith.constant 0 : i32
    return %arg0, %c0_i32, %c0_i32_0 : i32, i32, i32
  }
  func.func @transform_1(%arg0: i32) -> (i32, i32) {
    %c0_i32 = arith.constant 0 : i32
    %c0_i32_0 = arith.constant 0 : i32
    %c0_i32_1 = arith.constant 0 : i32
    return %c0_i32, %c0_i32_0 : i32, i32
  }
  func.func @transform_2(%arg0: i32) -> (i32, i32) {
    %c0_i32 = arith.constant 0 : i32
    %c0_i32_0 = arith.constant 0 : i32
    %c0_i32_1 = arith.constant 0 : i32
    return %c0_i32, %c0_i32_0 : i32, i32
  }
  func.func @transform_3(%arg0: i32) -> (i32, i32) {
    %c0_i32 = arith.constant 0 : i32
    %c0_i32_0 = arith.constant 0 : i32
    %c0_i32_1 = arith.constant 0 : i32
    return %c0_i32, %c0_i32_0 : i32, i32
  }
  func.func @transform_4(%arg0: i32) -> (i32, i32) {
    %c0_i32 = arith.constant 0 : i32
    %c0_i32_0 = arith.constant 0 : i32
    %c0_i32_1 = arith.constant 0 : i32
    return %c0_i32, %c0_i32_0 : i32, i32
  }
  func.func @transform_5(%arg0: i32) -> (i32, i32) {
    %c0_i32 = arith.constant 0 : i32
    %c0_i32_0 = arith.constant 0 : i32
    %c0_i32_1 = arith.constant 0 : i32
    return %c0_i32, %c0_i32_0 : i32, i32
  }
  func.func @transform_6(%arg0: i32) -> (i32, i32) {
    %c0_i32 = arith.constant 0 : i32
    %c0_i32_0 = arith.constant 0 : i32
    %c0_i32_1 = arith.constant 0 : i32
    return %c0_i32, %c0_i32_0 : i32, i32
  }
  func.func @transform_7(%arg0: i32) -> (i32, i32, i32) {
    %c0_i32 = arith.constant 0 : i32
    %c0_i32_0 = arith.constant 0 : i32
    %c0_i32_1 = arith.constant 0 : i32
    return %arg0, %c0_i32, %c0_i32_0 : i32, i32, i32
  }
}

</mosaic_0001>

<llo_original>
// kernel: tpu_custom_call.1
$region0: #{tpu_custom_call.1}
  #allocation0 [shape = 'u32[]', space=smem, size = 0x4, offset = 0x4, fixed_abs, tag = 'smem constant byte address 0x4 - core index']
  #allocation1 [shape = 'u32[144,128]{1,0:T(1,128)}', space=vmem, size = 0x12000, scoped, tag = 'internal scratch']
  %s0 = inlined_call_operand.vmem [shape: f32[2,8,32], index: 0, kind: input, shape index: {}]
  %s1 = inlined_call_operand.vmem [shape: f32[32,96], index: 1, kind: input, shape index: {}]
  %s2 = inlined_call_operand.vmem [shape: f32[32,32], index: 2, kind: input, shape index: {}]
  %s3 = inlined_call_operand.vmem [shape: f32[32,128], index: 3, kind: input, shape index: {}]
  %s4 = inlined_call_operand.vmem [shape: f32[128,32], index: 4, kind: input, shape index: {}]
  %s5 = inlined_call_operand.vmem [shape: f32[8,32], index: 5, kind: input, shape index: {}]
  %s6 = inlined_call_operand.vmem [shape: f32[4,128], index: 6, kind: input, shape index: {}]
  %s7 = inlined_call_operand.hbm [shape: f32[2,8,32], index: 7, kind: output, shape index: {}]
  %s8 = sld [smem:[#allocation0]]
  $region61: #{tpu_custom_call.1} parent=0
    _
  %s10 = ssub.s32 1, %s8
  %s11 = scalar_select 0, %s10, %s8
  $region1: #{tpu_custom_call.1} parent=0
    #allocation2 [shape = 'u8[8192]{0}', space=vmem, size = 0x2000, scoped, tag = 'output window, operand 0']
    #allocation3 [shape = 's32[2]{0}', space=sflag, size = 0x8, scoped, tag = 'scoped memory for tpu_custom_call.1']
    %12 = vsyncpa [#allocation3], 0
    %s13 = scalar_lea.sflag [#allocation3], 1
    %14 = vsyncpa %s13, 0
    loop: start=0, step=1, limit=4
    $region2: #{tpu_custom_call.1} parent=1 // loop_pre_header
      _
    $region3: #{tpu_custom_call.1} parent=1 // loop_header
      %s16 = sphi 0, %s20
      %p17 = scmp.ge.s32.totalorder %s16, 4
      %s26 = sphi 0, %s28
      %s29 = sphi 0, %s26
      %s30 = sphi 0, %s29
      %s46 = sphi 0, %s30
      %s50 = sphi 0, %s50
      %s52 = sphi 0, %s50
      %s53 = sphi 0, %s52
      %s67 = sphi 0, %s53
      %s71 = sphi 0, %s71
      %s73 = sphi 0, %s71
      %s74 = sphi 0, %s73
      %s88 = sphi 0, %s74
      %s92 = sphi 0, %s92
      %s94 = sphi 0, %s92
      %s95 = sphi 0, %s94
      %s109 = sphi 0, %s95
      %s113 = sphi 0, %s113
      %s115 = sphi 0, %s113
      %s116 = sphi 0, %s115
      %s130 = sphi 0, %s116
      %s134 = sphi 0, %s134
      %s136 = sphi 0, %s134
      %s137 = sphi 0, %s136
      %s151 = sphi 0, %s137
      %s155 = sphi 0, %s155
      %s157 = sphi 0, %s155
      %s158 = sphi 0, %s157
      %s172 = sphi 0, %s158
      %s178 = sphi 0, %s180
      %s181 = sphi 0, %s178
      %s182 = sphi 0, %s181
      %s198 = sphi 0, %s182
    $region4: #{tpu_custom_call.1} parent=1 // loop_header_branch
      %19 = sbr.rel (%p17) target = $region8
    $region5: #{tpu_custom_call.1} parent=1 // loop_body
      %s21 = ssub.s32 %s16, 1
      %s22 = ssub.s32 %s16, 2
      %s23 = sadd.s32 %s16, 1
      %s24 = ssub.s32 %s16, %s23
      %p25 = scmp.eq.s32.totalorder %s24, 0
      %s27 = sadd.s32 %s26, 1
      %s28 = scalar_select %p25, %s26, %s27
      %p31 = pneg %p25
      %p32 = scmp.eq.s32.totalorder %s16, 1
      %p33 = por %p31, %p32
      %p34 = scmp.ne.s32.totalorder %s26, %s29
      %p35 = scmp.eq.s32.totalorder %s16, 0
      %p36 = por %p34, %p35
      %p37 = scmp.ne.s32.totalorder %s26, %s29
      %p38 = scmp.eq.s32.totalorder %s21, 1
      %p39 = por %p37, %p38
      %p40 = scmp.ne.s32.totalorder %s29, %s30
      %p41 = scmp.eq.s32.totalorder %s21, 0
      %p42 = por %p40, %p41
      %p43 = scmp.ne.s32.totalorder %s29, %s30
      %p44 = scmp.eq.s32.totalorder %s22, 1
      %p45 = por %p43, %p44
      %p47 = scmp.ne.s32.totalorder %s30, %s46
      %p48 = scmp.eq.s32.totalorder %s22, 0
      %p49 = por %p47, %p48
      %s51 = sadd.s32 %s50, 1
      %p54 = scmp.eq.s32.totalorder %s16, 1
      %p55 = scmp.ne.s32.totalorder %s50, %s52
      %p56 = scmp.eq.s32.totalorder %s16, 0
      %p57 = por %p55, %p56
      %p58 = scmp.ne.s32.totalorder %s50, %s52
      %p59 = scmp.eq.s32.totalorder %s21, 1
      %p60 = por %p58, %p59
      %p61 = scmp.ne.s32.totalorder %s52, %s53
      %p62 = scmp.eq.s32.totalorder %s21, 0
      %p63 = por %p61, %p62
      %p64 = scmp.ne.s32.totalorder %s52, %s53
      %p65 = scmp.eq.s32.totalorder %s22, 1
      %p66 = por %p64, %p65
      %p68 = scmp.ne.s32.totalorder %s53, %s67
      %p69 = scmp.eq.s32.totalorder %s22, 0
      %p70 = por %p68, %p69
      %s72 = sadd.s32 %s71, 1
      %p75 = scmp.eq.s32.totalorder %s16, 1
      %p76 = scmp.ne.s32.totalorder %s71, %s73
      %p77 = scmp.eq.s32.totalorder %s16, 0
      %p78 = por %p76, %p77
      %p79 = scmp.ne.s32.totalorder %s71, %s73
      %p80 = scmp.eq.s32.totalorder %s21, 1
      %p81 = por %p79, %p80
      %p82 = scmp.ne.s32.totalorder %s73, %s74
      %p83 = scmp.eq.s32.totalorder %s21, 0
      %p84 = por %p82, %p83
      %p85 = scmp.ne.s32.totalorder %s73, %s74
      %p86 = scmp.eq.s32.totalorder %s22, 1
      %p87 = por %p85, %p86
      %p89 = scmp.ne.s32.totalorder %s74, %s88
      %p90 = scmp.eq.s32.totalorder %s22, 0
      %p91 = por %p89, %p90
      %s93 = sadd.s32 %s92, 1
      %p96 = scmp.eq.s32.totalorder %s16, 1
      %p97 = scmp.ne.s32.totalorder %s92, %s94
      %p98 = scmp.eq.s32.totalorder %s16, 0
      %p99 = por %p97, %p98
      %p100 = scmp.ne.s32.totalorder %s92, %s94
      %p101 = scmp.eq.s32.totalorder %s21, 1
      %p102 = por %p100, %p101
      %p103 = scmp.ne.s32.totalorder %s94, %s95
      %p104 = scmp.eq.s32.totalorder %s21, 0
      %p105 = por %p103, %p104
      %p106 = scmp.ne.s32.totalorder %s94, %s95
      %p107 = scmp.eq.s32.totalorder %s22, 1
      %p108 = por %p106, %p107
      %p110 = scmp.ne.s32.totalorder %s95, %s109
      %p111 = scmp.eq.s32.totalorder %s22, 0
      %p112 = por %p110, %p111
      %s114 = sadd.s32 %s113, 1
      %p117 = scmp.eq.s32.totalorder %s16, 1
      %p118 = scmp.ne.s32.totalorder %s113, %s115
      %p119 = scmp.eq.s32.totalorder %s16, 0
      %p120 = por %p118, %p119
      %p121 = scmp.ne.s32.totalorder %s113, %s115
      %p122 = scmp.eq.s32.totalorder %s21, 1
      %p123 = por %p121, %p122
      %p124 = scmp.ne.s32.totalorder %s115, %s116
      %p125 = scmp.eq.s32.totalorder %s21, 0
      %p126 = por %p124, %p125
      %p127 = scmp.ne.s32.totalorder %s115, %s116
      %p128 = scmp.eq.s32.totalorder %s22, 1
      %p129 = por %p127, %p128
      %p131 = scmp.ne.s32.totalorder %s116, %s130
      %p132 = scmp.eq.s32.totalorder %s22, 0
      %p133 = por %p131, %p132
      %s135 = sadd.s32 %s134, 1
      %p138 = scmp.eq.s32.totalorder %s16, 1
      %p139 = scmp.ne.s32.totalorder %s134, %s136
      %p140 = scmp.eq.s32.totalorder %s16, 0
      %p141 = por %p139, %p140
      %p142 = scmp.ne.s32.totalorder %s134, %s136
      %p143 = scmp.eq.s32.totalorder %s21, 1
      %p144 = por %p142, %p143
      %p145 = scmp.ne.s32.totalorder %s136, %s137
      %p146 = scmp.eq.s32.totalorder %s21, 0
      %p147 = por %p145, %p146
      %p148 = scmp.ne.s32.totalorder %s136, %s137
      %p149 = scmp.eq.s32.totalorder %s22, 1
      %p150 = por %p148, %p149
      %p152 = scmp.ne.s32.totalorder %s137, %s151
      %p153 = scmp.eq.s32.totalorder %s22, 0
      %p154 = por %p152, %p153
      %s156 = sadd.s32 %s155, 1
      %p159 = scmp.eq.s32.totalorder %s16, 1
      %p160 = scmp.ne.s32.totalorder %s155, %s157
      %p161 = scmp.eq.s32.totalorder %s16, 0
      %p162 = por %p160, %p161
      %p163 = scmp.ne.s32.totalorder %s155, %s157
      %p164 = scmp.eq.s32.totalorder %s21, 1
      %p165 = por %p163, %p164
      %p166 = scmp.ne.s32.totalorder %s157, %s158
      %p167 = scmp.eq.s32.totalorder %s21, 0
      %p168 = por %p166, %p167
      %p169 = scmp.ne.s32.totalorder %s157, %s158
      %p170 = scmp.eq.s32.totalorder %s22, 1
      %p171 = por %p169, %p170
      %p173 = scmp.ne.s32.totalorder %s158, %s172
      %p174 = scmp.eq.s32.totalorder %s22, 0
      %p175 = por %p173, %p174
      %s176 = ssub.s32 %s16, %s23
      %p177 = scmp.eq.s32.totalorder %s176, 0
      %s179 = sadd.s32 %s178, 1
      %s180 = scalar_select %p177, %s178, %s179
      %p183 = pneg %p177
      %p184 = scmp.eq.s32.totalorder %s16, 1
      %p185 = por %p183, %p184
      %p186 = scmp.ne.s32.totalorder %s178, %s181
      %p187 = scmp.eq.s32.totalorder %s16, 0
      %p188 = por %p186, %p187
      %p189 = scmp.ne.s32.totalorder %s178, %s181
      %p190 = scmp.eq.s32.totalorder %s21, 1
      %p191 = por %p189, %p190
      %p192 = scmp.ne.s32.totalorder %s181, %s182
      %p193 = scmp.eq.s32.totalorder %s21, 0
      %p194 = por %p192, %p193
      %p195 = scmp.ne.s32.totalorder %s181, %s182
      %p196 = scmp.eq.s32.totalorder %s22, 1
      %p197 = por %p195, %p196
      %p199 = scmp.ne.s32.totalorder %s182, %s198
      %p200 = scmp.eq.s32.totalorder %s22, 0
      %p201 = por %p199, %p200
      %p202 = scmp.le.s32.totalorder 1, %s16
      %p203 = scmp.lt.s32.totalorder %s16, 3
      %p204 = pnand %p202, %p203
      %p205 = pneg %p204
      // Predicated region
      $region9: #{tpu_custom_call.1} parent=5 // pred_check
        _
      $region10: #{tpu_custom_call.1} parent=5 // pred_check_branch
        %207 = sbr.rel (%p204) target = $region12
      $region11: #{tpu_custom_call.1} parent=5 // pred_region
        %s208 = ssub.s32 %s16, 1
        // Predicated region
        $region13: #{tpu_custom_call.1} parent=11 // pred_check
          %p209 = pneg %p63
        $region14: #{tpu_custom_call.1} parent=11 // pred_check_branch
          %211 = sbr.rel (%p209) target = $region16
        $region15: #{tpu_custom_call.1} parent=11 // pred_region
          _
        $region16: #{tpu_custom_call.1} parent=11 // pred_fallthru
          _
        // Predicated region
        $region17: #{tpu_custom_call.1} parent=11 // pred_check
          %p212 = pneg %p84
        $region18: #{tpu_custom_call.1} parent=11 // pred_check_branch
          %214 = sbr.rel (%p212) target = $region20
        $region19: #{tpu_custom_call.1} parent=11 // pred_region
          _
        $region20: #{tpu_custom_call.1} parent=11 // pred_fallthru
          _
        // Predicated region
        $region21: #{tpu_custom_call.1} parent=11 // pred_check
          %p215 = pneg %p105
        $region22: #{tpu_custom_call.1} parent=11 // pred_check_branch
          %217 = sbr.rel (%p215) target = $region24
        $region23: #{tpu_custom_call.1} parent=11 // pred_region
          _
        $region24: #{tpu_custom_call.1} parent=11 // pred_fallthru
          _
        // Predicated region
        $region25: #{tpu_custom_call.1} parent=11 // pred_check
          %p218 = pneg %p126
        $region26: #{tpu_custom_call.1} parent=11 // pred_check_branch
          %220 = sbr.rel (%p218) target = $region28
        $region27: #{tpu_custom_call.1} parent=11 // pred_region
          _
        $region28: #{tpu_custom_call.1} parent=11 // pred_fallthru
          _
        // Predicated region
        $region29: #{tpu_custom_call.1} parent=11 // pred_check
          %p221 = pneg %p147
        $region30: #{tpu_custom_call.1} parent=11 // pred_check_branch
          %223 = sbr.rel (%p221) target = $region32
        $region31: #{tpu_custom_call.1} parent=11 // pred_region
          _
        $region32: #{tpu_custom_call.1} parent=11 // pred_fallthru
          _
        // Predicated region
        $region33: #{tpu_custom_call.1} parent=11 // pred_check
          %p224 = pneg %p168
        $region34: #{tpu_custom_call.1} parent=11 // pred_check_branch
          %226 = sbr.rel (%p224) target = $region36
        $region35: #{tpu_custom_call.1} parent=11 // pred_region
          _
        $region36: #{tpu_custom_call.1} parent=11 // pred_fallthru
          _
      $region12: #{tpu_custom_call.1} parent=5 // pred_fallthru
        _
      %p227 = scmp.lt.s32.totalorder %s16, 2
      // Predicated region
      $region37: #{tpu_custom_call.1} parent=5 // pred_check
        %p228 = pneg %p227
      $region38: #{tpu_custom_call.1} parent=5 // pred_check_branch
        %230 = sbr.rel (%p228) target = $region40
      $region39: #{tpu_custom_call.1} parent=5 // pred_region
        // Predicated region
        $region41: #{tpu_custom_call.1} parent=39 // pred_check
          %p231 = pneg %p36
        $region42: #{tpu_custom_call.1} parent=39 // pred_check_branch
          %233 = sbr.rel (%p231) target = $region44
        $region43: #{tpu_custom_call.1} parent=39 // pred_region
          %p234 = scmp.lt.s32.totalorder %s16, 1
          %s235 = scalar_select %p234, %s16, 1
          %s236 = smul.addr %s235, 8
          %s237 = scalar_lea.vmem %s0, %s236
        $region44: #{tpu_custom_call.1} parent=39 // pred_fallthru
          _
      $region40: #{tpu_custom_call.1} parent=5 // pred_fallthru
        _
      %p238 = scmp.le.s32.totalorder 1, %s16
      %p239 = scmp.lt.s32.totalorder %s16, 3
      %p240 = pnand %p238, %p239
      %p241 = pneg %p240
      // Predicated region
      $region45: #{tpu_custom_call.1} parent=5 // pred_check
        _
      $region46: #{tpu_custom_call.1} parent=5 // pred_check_branch
        %243 = sbr.rel (%p240) target = $region48
      $region47: #{tpu_custom_call.1} parent=5 // pred_region
        %s244 = ssub.s32 %s16, 1
        %p245 = scmp.lt.s32.totalorder %s21, 1
        %s246 = scalar_select %p245, %s21, 1
        %s247 = smul.addr %s246, 8
        %s248 = scalar_lea.vmem %s0, %s247
        %p249 = pneg %p42
        %p250 = pneg %p39
        %p251 = pneg %p63
        %p252 = pneg %p60
        %p253 = pneg %p84
        %p254 = pneg %p81
        %p255 = pneg %p105
        %p256 = pneg %p102
        %p257 = pneg %p126
        %p258 = pneg %p123
        %p259 = pneg %p147
        %p260 = pneg %p144
        %p261 = pneg %p168
        %p262 = pneg %p165
        %p263 = pneg %p194
        %p264 = pneg %p191
        %s265 = sand.u32 %s181, 1
        %s266 = scalar_lea.sflag [#allocation3], %s265
        %s267 = sand.u32 %s181, 1
        %s268 = smul.addr %s267, 8
        %s269 = scalar_lea.vmem [#allocation2], %s268
        %p270 = scmp.lt.s32.totalorder %s21, 1
        %s271 = scalar_select %p270, %s21, 1
        %s272 = smul.addr %s271, 8
        %s273 = scalar_lea.vmem %s0, %s272
        %v274 = vld [vmem:[%s273] sm:$0xff]
        %v275 = vld [vmem:[%s5] sm:$0x1]
        %v276 = vld [vmem:[%s5 + $0x1] sm:$0x1]
        %v277 = vld [vmem:[%s5 + $0x2] sm:$0x1]
        %v278 = vld [vmem:[%s5 + $0x3] sm:$0x1]
        %v279 = vld [vmem:[%s5 + $0x4] sm:$0x1]
        %v280 = vld [vmem:[%s5 + $0x5] sm:$0x1]
        %v281 = vld [vmem:[%s5 + $0x6] sm:$0x1]
        %v282 = vld [vmem:[%s5 + $0x7] sm:$0x1]
        %v283 = vld [vmem:[%s6] sm:$0x1]
        %v284 = vld [vmem:[%s6 + $0x1] sm:$0x1]
        %v285 = vld [vmem:[%s6 + $0x2] sm:$0x1]
        %v286 = vld [vmem:[%s6 + $0x3] sm:$0x1]
        %vm287 = vcmask 261120
        %v288 = vsel %vm287, %v274, 0.0
        %289 = vadd.xlane.f32.xlu0 %v288
        %v290 = vpop.xlane.xlu0 %289
        %v291 = vrcp.pop 32.0
        %v292 = vmul.f32 %v290, %v291
        %v293 = vsub.f32 %v274, %v292
        %v294 = vmul.f32 %v293, %v293
        %v295 = vsel %vm287, %v294, 0.0
        %296 = vadd.xlane.f32.xlu0 %v295
        %v297 = vpop.xlane.xlu0 %296
        %v298 = vmul.f32 %v297, %v291
        %v299 = vadd.f32 %v298, 1e-05
        %v300 = vrsqrt.pop %v299
        %v301 = vmul.f32 %v293, %v300
        %v302 = vlaneseq
        %v303 = vshrl.u32 %v302, 7
        %v304 = vsub.s32 0, %v303
        %v305 = vrot.slane %v275, %v304
        %v306 = vmul.f32 %v301, %v305
        %v307 = vlaneseq
        %v308 = vshrl.u32 %v307, 7
        %v309 = vsub.s32 0, %v308
        %v310 = vrot.slane %v276, %v309
        %v311 = vadd.f32 %v306, %v310
        %v312 = vld [vmem:[%s1] sm:$0xff]
        %v313 = vld [vmem:[%s1 + $0x8] sm:$0xff]
        %v314 = vld [vmem:[%s1 + $0x10] sm:$0xff]
        %v315 = vld [vmem:[%s1 + $0x18] sm:$0xff]
        %v316 = vlaneseq
        %v317 = vshrl.u32 %v316, 7
        %v318 = vsub.s32 0, %v317
        %v319 = vrot.slane %v286, %v318
        %v321 = vsel %vm287, %v311, 0
        %323 = vmatprep.subr.mxu0 0.0
        %324 = vmatpush1.msra.mxu0 %v312
        %325 = vmatprep.subr.mxu0 0.0
        %326 = vmatpush1.msra.mxu0 %v313
        %327 = vmatprep.subr.mxu0 0.0
        %328 = vmatpush1.msra.mxu0 %v314
        %329 = vmatprep.subr.mxu0 0.0
        %330 = vmatpush1.msra.mxu0 %v315
        %331 = vmatprep.subr.mxu0 0.0
        %332 = vmatpush1.msra.mxu0 0.0
        %333 = vmatprep.subr.mxu0 0.0
        %334 = vmatpush1.msra.mxu0 0.0
        %335 = vmatprep.subr.mxu0 0.0
        %336 = vmatpush1.msra.mxu0 0.0
        %337 = vmatprep.subr.mxu0 0.0
        %338 = vmatpush1.msra.mxu0 0.0
        %339 = vmatprep.subr.mxu0 0.0
        %340 = vmatpush1.msra.mxu0 0.0
        %341 = vmatprep.subr.mxu0 0.0
        %342 = vmatpush1.msra.mxu0 0.0
        %343 = vmatprep.subr.mxu0 0.0
        %344 = vmatpush1.msra.mxu0 0.0
        %345 = vmatprep.subr.mxu0 0.0
        %346 = vmatpush1.msra.mxu0 0.0
        %347 = vmatprep.subr.mxu0 0.0
        %348 = vmatpush1.msra.mxu0 0.0
        %349 = vmatprep.subr.mxu0 0.0
        %350 = vmatpush1.msra.mxu0 0.0
        %351 = vmatprep.subr.mxu0 0.0
        %352 = vmatpush1.msra.mxu0 0.0
        %353 = vmatprep.subr.mxu0 0.0
        %354 = vmatpush1.msra.mxu0 0.0
        %355 = vmatprep.subr.mxu0 0.0
        %356 = vmatpush1.msra.mxu0 0.0
        %357 = vmatprep.subr.mxu0 0.0
        %358 = vmatpush1.msra.mxu0 0.0
        %359 = vmatprep.subr.mxu0 0.0
        %360 = vmatpush1.msra.mxu0 0.0
        %361 = vmatprep.subr.mxu0 0.0
        %362 = vmatpush1.msra.mxu0 0.0
        %363 = vmatprep.subr.mxu0 0.0
        %364 = vmatpush1.msra.mxu0 0.0
        %365 = vmatprep.subr.mxu0 0.0
        %366 = vmatpush1.msra.mxu0 0.0
        %367 = vmatprep.subr.mxu0 0.0
        %368 = vmatpush1.msra.mxu0 0.0
        %369 = vmatprep.subr.mxu0 0.0
        %370 = vmatpush1.msra.mxu0 0.0
        %371 = vmatprep.subr.mxu0 0.0
        %372 = vmatpush1.msra.mxu0 0.0
        %373 = vmatprep.subr.mxu0 0.0
        %374 = vmatpush1.msra.mxu0 0.0
        %375 = vmatprep.subr.mxu0 0.0
        %376 = vmatpush1.msra.mxu0 0.0
        %377 = vmatprep.subr.mxu0 0.0
        %378 = vmatpush1.msra.mxu0 0.0
        %379 = vmatprep.subr.mxu0 0.0
        %380 = vmatpush1.msra.mxu0 0.0
        %381 = vmatprep.subr.mxu0 0.0
        %382 = vmatpush1.msra.mxu0 0.0
        %383 = vmatprep.subr.mxu0 0.0
        %384 = vmatpush1.msra.mxu0 0.0
        %385 = vmatprep.subr.mxu0 0.0
        %386 = vmatpush1.msra.mxu0 0.0
        %387 = vmatprep.mubr.f32.mxu0 0.0
        %388 = vmatmul.mubr.f32.gmra.mrb[0].mxu0 %v321
        %v389 = vpop.f32.mrb[0].mxu0
        %v390 = vadd.f32 %v319, %v389
        %v391 = vpop.f32.mrb[0].mxu0
        %392 = vdwg.mxu0
        %394 = vrot.lane.b32.xlu0 %v390, 96
        %v395 = vpop.permute.xlu0 %394
        %vm396 = vcmask 64512
        %v397 = vsel %vm396, %v390, 0
        %v399 = vsel %vm396, %v395, 0
        %401 = vmatprep.subr.mxu0 0.0
        %402 = vmatpush1.xpose.msra.mxu0 %v399
        %403 = vmatprep.subr.mxu0 0.0
        %404 = vmatpush1.xpose.msra.mxu0 0.0
        %405 = vmatprep.subr.mxu0 0.0
        %406 = vmatpush1.xpose.msra.mxu0 0.0
        %407 = vmatprep.subr.mxu0 0.0
        %408 = vmatpush1.xpose.msra.mxu0 0.0
        %409 = vmatprep.subr.mxu0 0.0
        %410 = vmatpush1.xpose.msra.mxu0 0.0
        %411 = vmatprep.subr.mxu0 0.0
        %412 = vmatpush1.xpose.msra.mxu0 0.0
        %413 = vmatprep.subr.mxu0 0.0
        %414 = vmatpush1.xpose.msra.mxu0 0.0
        %415 = vmatprep.subr.mxu0 0.0
        %416 = vmatpush1.xpose.msra.mxu0 0.0
        %417 = vmatprep.subr.mxu0 0.0
        %418 = vmatpush1.xpose.msra.mxu0 0.0
        %419 = vmatprep.subr.mxu0 0.0
        %420 = vmatpush1.xpose.msra.mxu0 0.0
        %421 = vmatprep.subr.mxu0 0.0
        %422 = vmatpush1.xpose.msra.mxu0 0.0
        %423 = vmatprep.subr.mxu0 0.0
        %424 = vmatpush1.xpose.msra.mxu0 0.0
        %425 = vmatprep.subr.mxu0 0.0
        %426 = vmatpush1.xpose.msra.mxu0 0.0
        %427 = vmatprep.subr.mxu0 0.0
        %428 = vmatpush1.xpose.msra.mxu0 0.0
        %429 = vmatprep.subr.mxu0 0.0
        %430 = vmatpush1.xpose.msra.mxu0 0.0
        %431 = vmatprep.subr.mxu0 0.0
        %432 = vmatpush1.xpose.msra.mxu0 0.0
        %433 = vmatprep.subr.mxu0 0.0
        %434 = vmatpush1.xpose.msra.mxu0 0.0
        %435 = vmatprep.subr.mxu0 0.0
        %436 = vmatpush1.xpose.msra.mxu0 0.0
        %437 = vmatprep.subr.mxu0 0.0
        %438 = vmatpush1.xpose.msra.mxu0 0.0
        %439 = vmatprep.subr.mxu0 0.0
        %440 = vmatpush1.xpose.msra.mxu0 0.0
        %441 = vmatprep.subr.mxu0 0.0
        %442 = vmatpush1.xpose.msra.mxu0 0.0
        %443 = vmatprep.subr.mxu0 0.0
        %444 = vmatpush1.xpose.msra.mxu0 0.0
        %445 = vmatprep.subr.mxu0 0.0
        %446 = vmatpush1.xpose.msra.mxu0 0.0
        %447 = vmatprep.subr.mxu0 0.0
        %448 = vmatpush1.xpose.msra.mxu0 0.0
        %449 = vmatprep.subr.mxu0 0.0
        %450 = vmatpush1.xpose.msra.mxu0 0.0
        %451 = vmatprep.subr.mxu0 0.0
        %452 = vmatpush1.xpose.msra.mxu0 0.0
        %453 = vmatprep.subr.mxu0 0.0
        %454 = vmatpush1.xpose.msra.mxu0 0.0
        %455 = vmatprep.subr.mxu0 0.0
        %456 = vmatpush1.xpose.msra.mxu0 0.0
        %457 = vmatprep.subr.mxu0 0.0
        %458 = vmatpush1.xpose.msra.mxu0 0.0
        %459 = vmatprep.subr.mxu0 0.0
        %460 = vmatpush1.xpose.msra.mxu0 0.0
        %461 = vmatprep.subr.mxu0 0.0
        %462 = vmatpush1.xpose.msra.mxu0 0.0
        %463 = vmatprep.subr.mxu0 0.0
        %464 = vmatpush1.xpose.msra.mxu0 0.0
        %465 = vmatprep.mubr.f32.mxu0 0.0
        %466 = vmatmul.mubr.f32.gmra.mrb[0].mxu0 %v397
        %v467 = vpop.f32.mrb[0].mxu0
        %v468 = vadd.f32 0.0, %v467
        %v469 = vpop.f32.mrb[0].mxu0
        %470 = vdwg.mxu0
        %v471 = vsel %vm396, %v468, -inf
        %472 = vmax.xlane.f32.xlu0 %v471
        %v473 = vpop.xlane.xlu0 %472
        %v474 = vsub.f32 %v468, %v473
        %v475 = vmul.f32 %v474, 1.442695
        %v476 = vpow.pop %v475
        %v477 = vsel %vm396, %v476, 0.0
        %478 = vadd.xlane.f32.xlu0 %v477
        %v479 = vpop.xlane.xlu0 %478
        %v480 = vrcp.pop %v479
        %v481 = vmul.f32 %v476, %v480
        %482 = vrot.lane.b32.xlu0 %v390, 64
        %v483 = vpop.permute.xlu0 %482
        %v486 = vsel %vm396, %v481, 0
        %488 = vmatprep.subr.mxu0 0.0
        %489 = vmatpush1.msra.mxu0 %v483
        %490 = vmatprep.subr.mxu0 0.0
        %491 = vmatpush1.msra.mxu0 0.0
        %492 = vmatprep.subr.mxu0 0.0
        %493 = vmatpush1.msra.mxu0 0.0
        %494 = vmatprep.subr.mxu0 0.0
        %495 = vmatpush1.msra.mxu0 0.0
        %496 = vmatprep.subr.mxu0 0.0
        %497 = vmatpush1.msra.mxu0 0.0
        %498 = vmatprep.subr.mxu0 0.0
        %499 = vmatpush1.msra.mxu0 0.0
        %500 = vmatprep.subr.mxu0 0.0
        %501 = vmatpush1.msra.mxu0 0.0
        %502 = vmatprep.subr.mxu0 0.0
        %503 = vmatpush1.msra.mxu0 0.0
        %504 = vmatprep.subr.mxu0 0.0
        %505 = vmatpush1.msra.mxu0 0.0
        %506 = vmatprep.subr.mxu0 0.0
        %507 = vmatpush1.msra.mxu0 0.0
        %508 = vmatprep.subr.mxu0 0.0
        %509 = vmatpush1.msra.mxu0 0.0
        %510 = vmatprep.subr.mxu0 0.0
        %511 = vmatpush1.msra.mxu0 0.0
        %512 = vmatprep.subr.mxu0 0.0
        %513 = vmatpush1.msra.mxu0 0.0
        %514 = vmatprep.subr.mxu0 0.0
        %515 = vmatpush1.msra.mxu0 0.0
        %516 = vmatprep.subr.mxu0 0.0
        %517 = vmatpush1.msra.mxu0 0.0
        %518 = vmatprep.subr.mxu0 0.0
        %519 = vmatpush1.msra.mxu0 0.0
        %520 = vmatprep.subr.mxu0 0.0
        %521 = vmatpush1.msra.mxu0 0.0
        %522 = vmatprep.subr.mxu0 0.0
        %523 = vmatpush1.msra.mxu0 0.0
        %524 = vmatprep.subr.mxu0 0.0
        %525 = vmatpush1.msra.mxu0 0.0
        %526 = vmatprep.subr.mxu0 0.0
        %527 = vmatpush1.msra.mxu0 0.0
        %528 = vmatprep.subr.mxu0 0.0
        %529 = vmatpush1.msra.mxu0 0.0
        %530 = vmatprep.subr.mxu0 0.0
        %531 = vmatpush1.msra.mxu0 0.0
        %532 = vmatprep.subr.mxu0 0.0
        %533 = vmatpush1.msra.mxu0 0.0
        %534 = vmatprep.subr.mxu0 0.0
        %535 = vmatpush1.msra.mxu0 0.0
        %536 = vmatprep.subr.mxu0 0.0
        %537 = vmatpush1.msra.mxu0 0.0
        %538 = vmatprep.subr.mxu0 0.0
        %539 = vmatpush1.msra.mxu0 0.0
        %540 = vmatprep.subr.mxu0 0.0
        %541 = vmatpush1.msra.mxu0 0.0
        %542 = vmatprep.subr.mxu0 0.0
        %543 = vmatpush1.msra.mxu0 0.0
        %544 = vmatprep.subr.mxu0 0.0
        %545 = vmatpush1.msra.mxu0 0.0
        %546 = vmatprep.subr.mxu0 0.0
        %547 = vmatpush1.msra.mxu0 0.0
        %548 = vmatprep.subr.mxu0 0.0
        %549 = vmatpush1.msra.mxu0 0.0
        %550 = vmatprep.subr.mxu0 0.0
        %551 = vmatpush1.msra.mxu0 0.0
        %552 = vmatprep.mubr.f32.mxu0 0.0
        %553 = vmatmul.mubr.f32.gmra.mrb[0].mxu0 %v486
        %v554 = vpop.f32.mrb[0].mxu0
        %v555 = vadd.f32 0.0, %v554
        %v556 = vpop.f32.mrb[0].mxu0
        %557 = vdwg.mxu0
        %558 = vrot.lane.b32.xlu0 %v390, 120
        %v559 = vpop.permute.xlu0 %558
        %560 = vrot.lane.b32.xlu0 %v390, 88
        %v561 = vpop.permute.xlu0 %560
        %v562 = vsel %vm396, %v559, 0
        %v564 = vsel %vm396, %v561, 0
        %566 = vmatprep.subr.mxu0 0.0
        %567 = vmatpush1.xpose.msra.mxu0 %v564
        %568 = vmatprep.subr.mxu0 0.0
        %569 = vmatpush1.xpose.msra.mxu0 0.0
        %570 = vmatprep.subr.mxu0 0.0
        %571 = vmatpush1.xpose.msra.mxu0 0.0
        %572 = vmatprep.subr.mxu0 0.0
        %573 = vmatpush1.xpose.msra.mxu0 0.0
        %574 = vmatprep.subr.mxu0 0.0
        %575 = vmatpush1.xpose.msra.mxu0 0.0
        %576 = vmatprep.subr.mxu0 0.0
        %577 = vmatpush1.xpose.msra.mxu0 0.0
        %578 = vmatprep.subr.mxu0 0.0
        %579 = vmatpush1.xpose.msra.mxu0 0.0
        %580 = vmatprep.subr.mxu0 0.0
        %581 = vmatpush1.xpose.msra.mxu0 0.0
        %582 = vmatprep.subr.mxu0 0.0
        %583 = vmatpush1.xpose.msra.mxu0 0.0
        %584 = vmatprep.subr.mxu0 0.0
        %585 = vmatpush1.xpose.msra.mxu0 0.0
        %586 = vmatprep.subr.mxu0 0.0
        %587 = vmatpush1.xpose.msra.mxu0 0.0
        %588 = vmatprep.subr.mxu0 0.0
        %589 = vmatpush1.xpose.msra.mxu0 0.0
        %590 = vmatprep.subr.mxu0 0.0
        %591 = vmatpush1.xpose.msra.mxu0 0.0
        %592 = vmatprep.subr.mxu0 0.0
        %593 = vmatpush1.xpose.msra.mxu0 0.0
        %594 = vmatprep.subr.mxu0 0.0
        %595 = vmatpush1.xpose.msra.mxu0 0.0
        %596 = vmatprep.subr.mxu0 0.0
        %597 = vmatpush1.xpose.msra.mxu0 0.0
        %598 = vmatprep.subr.mxu0 0.0
        %599 = vmatpush1.xpose.msra.mxu0 0.0
        %600 = vmatprep.subr.mxu0 0.0
        %601 = vmatpush1.xpose.msra.mxu0 0.0
        %602 = vmatprep.subr.mxu0 0.0
        %603 = vmatpush1.xpose.msra.mxu0 0.0
        %604 = vmatprep.subr.mxu0 0.0
        %605 = vmatpush1.xpose.msra.mxu0 0.0
        %606 = vmatprep.subr.mxu0 0.0
        %607 = vmatpush1.xpose.msra.mxu0 0.0
        %608 = vmatprep.subr.mxu0 0.0
        %609 = vmatpush1.xpose.msra.mxu0 0.0
        %610 = vmatprep.subr.mxu0 0.0
        %611 = vmatpush1.xpose.msra.mxu0 0.0
        %612 = vmatprep.subr.mxu0 0.0
        %613 = vmatpush1.xpose.msra.mxu0 0.0
        %614 = vmatprep.subr.mxu0 0.0
        %615 = vmatpush1.xpose.msra.mxu0 0.0
        %616 = vmatprep.subr.mxu0 0.0
        %617 = vmatpush1.xpose.msra.mxu0 0.0
        %618 = vmatprep.subr.mxu0 0.0
        %619 = vmatpush1.xpose.msra.mxu0 0.0
        %620 = vmatprep.subr.mxu0 0.0
        %621 = vmatpush1.xpose.msra.mxu0 0.0
        %622 = vmatprep.subr.mxu0 0.0
        %623 = vmatpush1.xpose.msra.mxu0 0.0
        %624 = vmatprep.subr.mxu0 0.0
        %625 = vmatpush1.xpose.msra.mxu0 0.0
        %626 = vmatprep.subr.mxu0 0.0
        %627 = vmatpush1.xpose.msra.mxu0 0.0
        %628 = vmatprep.subr.mxu0 0.0
        %629 = vmatpush1.xpose.msra.mxu0 0.0
        %630 = vmatprep.mubr.f32.mxu0 0.0
        %631 = vmatmul.mubr.f32.gmra.mrb[0].mxu0 %v562
        %v632 = vpop.f32.mrb[0].mxu0
        %v633 = vadd.f32 0.0, %v632
        %v634 = vpop.f32.mrb[0].mxu0
        %635 = vdwg.mxu0
        %v636 = vsel %vm396, %v633, -inf
        %637 = vmax.xlane.f32.xlu0 %v636
        %v638 = vpop.xlane.xlu0 %637
        %v639 = vsub.f32 %v633, %v638
        %v640 = vmul.f32 %v639, 1.442695
        %v641 = vpow.pop %v640
        %v642 = vsel %vm396, %v641, 0.0
        %643 = vadd.xlane.f32.xlu0 %v642
        %v644 = vpop.xlane.xlu0 %643
        %v645 = vrcp.pop %v644
        %v646 = vmul.f32 %v641, %v645
        %647 = vrot.lane.b32.xlu0 %v390, 56
        %v648 = vpop.permute.xlu0 %647
        %v651 = vsel %vm396, %v646, 0
        %653 = vmatprep.subr.mxu0 0.0
        %654 = vmatpush1.msra.mxu0 %v648
        %655 = vmatprep.subr.mxu0 0.0
        %656 = vmatpush1.msra.mxu0 0.0
        %657 = vmatprep.subr.mxu0 0.0
        %658 = vmatpush1.msra.mxu0 0.0
        %659 = vmatprep.subr.mxu0 0.0
        %660 = vmatpush1.msra.mxu0 0.0
        %661 = vmatprep.subr.mxu0 0.0
        %662 = vmatpush1.msra.mxu0 0.0
        %663 = vmatprep.subr.mxu0 0.0
        %664 = vmatpush1.msra.mxu0 0.0
        %665 = vmatprep.subr.mxu0 0.0
        %666 = vmatpush1.msra.mxu0 0.0
        %667 = vmatprep.subr.mxu0 0.0
        %668 = vmatpush1.msra.mxu0 0.0
        %669 = vmatprep.subr.mxu0 0.0
        %670 = vmatpush1.msra.mxu0 0.0
        %671 = vmatprep.subr.mxu0 0.0
        %672 = vmatpush1.msra.mxu0 0.0
        %673 = vmatprep.subr.mxu0 0.0
        %674 = vmatpush1.msra.mxu0 0.0
        %675 = vmatprep.subr.mxu0 0.0
        %676 = vmatpush1.msra.mxu0 0.0
        %677 = vmatprep.subr.mxu0 0.0
        %678 = vmatpush1.msra.mxu0 0.0
        %679 = vmatprep.subr.mxu0 0.0
        %680 = vmatpush1.msra.mxu0 0.0
        %681 = vmatprep.subr.mxu0 0.0
        %682 = vmatpush1.msra.mxu0 0.0
        %683 = vmatprep.subr.mxu0 0.0
        %684 = vmatpush1.msra.mxu0 0.0
        %685 = vmatprep.subr.mxu0 0.0
        %686 = vmatpush1.msra.mxu0 0.0
        %687 = vmatprep.subr.mxu0 0.0
        %688 = vmatpush1.msra.mxu0 0.0
        %689 = vmatprep.subr.mxu0 0.0
        %690 = vmatpush1.msra.mxu0 0.0
        %691 = vmatprep.subr.mxu0 0.0
        %692 = vmatpush1.msra.mxu0 0.0
        %693 = vmatprep.subr.mxu0 0.0
        %694 = vmatpush1.msra.mxu0 0.0
        %695 = vmatprep.subr.mxu0 0.0
        %696 = vmatpush1.msra.mxu0 0.0
        %697 = vmatprep.subr.mxu0 0.0
        %698 = vmatpush1.msra.mxu0 0.0
        %699 = vmatprep.subr.mxu0 0.0
        %700 = vmatpush1.msra.mxu0 0.0
        %701 = vmatprep.subr.mxu0 0.0
        %702 = vmatpush1.msra.mxu0 0.0
        %703 = vmatprep.subr.mxu0 0.0
        %704 = vmatpush1.msra.mxu0 0.0
        %705 = vmatprep.subr.mxu0 0.0
        %706 = vmatpush1.msra.mxu0 0.0
        %707 = vmatprep.subr.mxu0 0.0
        %708 = vmatpush1.msra.mxu0 0.0
        %709 = vmatprep.subr.mxu0 0.0
        %710 = vmatpush1.msra.mxu0 0.0
        %711 = vmatprep.subr.mxu0 0.0
        %712 = vmatpush1.msra.mxu0 0.0
        %713 = vmatprep.subr.mxu0 0.0
        %714 = vmatpush1.msra.mxu0 0.0
        %715 = vmatprep.subr.mxu0 0.0
        %716 = vmatpush1.msra.mxu0 0.0
        %717 = vmatprep.mubr.f32.mxu0 0.0
        %718 = vmatmul.mubr.f32.gmra.mrb[0].mxu0 %v651
        %v719 = vpop.f32.mrb[0].mxu0
        %v720 = vadd.f32 0.0, %v719
        %v721 = vpop.f32.mrb[0].mxu0
        %722 = vdwg.mxu0
        %723 = vrot.lane.b32.xlu0 %v390, 112
        %v724 = vpop.permute.xlu0 %723
        %725 = vrot.lane.b32.xlu0 %v390, 80
        %v726 = vpop.permute.xlu0 %725
        %v727 = vsel %vm396, %v724, 0
        %v729 = vsel %vm396, %v726, 0
        %731 = vmatprep.subr.mxu0 0.0
        %732 = vmatpush1.xpose.msra.mxu0 %v729
        %733 = vmatprep.subr.mxu0 0.0
        %734 = vmatpush1.xpose.msra.mxu0 0.0
        %735 = vmatprep.subr.mxu0 0.0
        %736 = vmatpush1.xpose.msra.mxu0 0.0
        %737 = vmatprep.subr.mxu0 0.0
        %738 = vmatpush1.xpose.msra.mxu0 0.0
        %739 = vmatprep.subr.mxu0 0.0
        %740 = vmatpush1.xpose.msra.mxu0 0.0
        %741 = vmatprep.subr.mxu0 0.0
        %742 = vmatpush1.xpose.msra.mxu0 0.0
        %743 = vmatprep.subr.mxu0 0.0
        %744 = vmatpush1.xpose.msra.mxu0 0.0
        %745 = vmatprep.subr.mxu0 0.0
        %746 = vmatpush1.xpose.msra.mxu0 0.0
        %747 = vmatprep.subr.mxu0 0.0
        %748 = vmatpush1.xpose.msra.mxu0 0.0
        %749 = vmatprep.subr.mxu0 0.0
        %750 = vmatpush1.xpose.msra.mxu0 0.0
        %751 = vmatprep.subr.mxu0 0.0
        %752 = vmatpush1.xpose.msra.mxu0 0.0
        %753 = vmatprep.subr.mxu0 0.0
        %754 = vmatpush1.xpose.msra.mxu0 0.0
        %755 = vmatprep.subr.mxu0 0.0
        %756 = vmatpush1.xpose.msra.mxu0 0.0
        %757 = vmatprep.subr.mxu0 0.0
        %758 = vmatpush1.xpose.msra.mxu0 0.0
        %759 = vmatprep.subr.mxu0 0.0
        %760 = vmatpush1.xpose.msra.mxu0 0.0
        %761 = vmatprep.subr.mxu0 0.0
        %762 = vmatpush1.xpose.msra.mxu0 0.0
        %763 = vmatprep.subr.mxu0 0.0
        %764 = vmatpush1.xpose.msra.mxu0 0.0
        %765 = vmatprep.subr.mxu0 0.0
        %766 = vmatpush1.xpose.msra.mxu0 0.0
        %767 = vmatprep.subr.mxu0 0.0
        %768 = vmatpush1.xpose.msra.mxu0 0.0
        %769 = vmatprep.subr.mxu0 0.0
        %770 = vmatpush1.xpose.msra.mxu0 0.0
        %771 = vmatprep.subr.mxu0 0.0
        %772 = vmatpush1.xpose.msra.mxu0 0.0
        %773 = vmatprep.subr.mxu0 0.0
        %774 = vmatpush1.xpose.msra.mxu0 0.0
        %775 = vmatprep.subr.mxu0 0.0
        %776 = vmatpush1.xpose.msra.mxu0 0.0
        %777 = vmatprep.subr.mxu0 0.0
        %778 = vmatpush1.xpose.msra.mxu0 0.0
        %779 = vmatprep.subr.mxu0 0.0
        %780 = vmatpush1.xpose.msra.mxu0 0.0
        %781 = vmatprep.subr.mxu0 0.0
        %782 = vmatpush1.xpose.msra.mxu0 0.0
        %783 = vmatprep.subr.mxu0 0.0
        %784 = vmatpush1.xpose.msra.mxu0 0.0
        %785 = vmatprep.subr.mxu0 0.0
        %786 = vmatpush1.xpose.msra.mxu0 0.0
        %787 = vmatprep.subr.mxu0 0.0
        %788 = vmatpush1.xpose.msra.mxu0 0.0
        %789 = vmatprep.subr.mxu0 0.0
        %790 = vmatpush1.xpose.msra.mxu0 0.0
        %791 = vmatprep.subr.mxu0 0.0
        %792 = vmatpush1.xpose.msra.mxu0 0.0
        %793 = vmatprep.subr.mxu0 0.0
        %794 = vmatpush1.xpose.msra.mxu0 0.0
        %795 = vmatprep.mubr.f32.mxu0 0.0
        %796 = vmatmul.mubr.f32.gmra.mrb[0].mxu0 %v727
        %v797 = vpop.f32.mrb[0].mxu0
        %v798 = vadd.f32 0.0, %v797
        %v799 = vpop.f32.mrb[0].mxu0
        %800 = vdwg.mxu0
        %v801 = vsel %vm396, %v798, -inf
        %802 = vmax.xlane.f32.xlu0 %v801
        %v803 = vpop.xlane.xlu0 %802
        %v804 = vsub.f32 %v798, %v803
        %v805 = vmul.f32 %v804, 1.442695
        %v806 = vpow.pop %v805
        %v807 = vsel %vm396, %v806, 0.0
        %808 = vadd.xlane.f32.xlu0 %v807
        %v809 = vpop.xlane.xlu0 %808
        %v810 = vrcp.pop %v809
        %v811 = vmul.f32 %v806, %v810
        %812 = vrot.lane.b32.xlu0 %v390, 48
        %v813 = vpop.permute.xlu0 %812
        %v816 = vsel %vm396, %v811, 0
        %818 = vmatprep.subr.mxu0 0.0
        %819 = vmatpush1.msra.mxu0 %v813
        %820 = vmatprep.subr.mxu0 0.0
        %821 = vmatpush1.msra.mxu0 0.0
        %822 = vmatprep.subr.mxu0 0.0
        %823 = vmatpush1.msra.mxu0 0.0
        %824 = vmatprep.subr.mxu0 0.0
        %825 = vmatpush1.msra.mxu0 0.0
        %826 = vmatprep.subr.mxu0 0.0
        %827 = vmatpush1.msra.mxu0 0.0
        %828 = vmatprep.subr.mxu0 0.0
        %829 = vmatpush1.msra.mxu0 0.0
        %830 = vmatprep.subr.mxu0 0.0
        %831 = vmatpush1.msra.mxu0 0.0
        %832 = vmatprep.subr.mxu0 0.0
        %833 = vmatpush1.msra.mxu0 0.0
        %834 = vmatprep.subr.mxu0 0.0
        %835 = vmatpush1.msra.mxu0 0.0
        %836 = vmatprep.subr.mxu0 0.0
        %837 = vmatpush1.msra.mxu0 0.0
        %838 = vmatprep.subr.mxu0 0.0
        %839 = vmatpush1.msra.mxu0 0.0
        %840 = vmatprep.subr.mxu0 0.0
        %841 = vmatpush1.msra.mxu0 0.0
        %842 = vmatprep.subr.mxu0 0.0
        %843 = vmatpush1.msra.mxu0 0.0
        %844 = vmatprep.subr.mxu0 0.0
        %845 = vmatpush1.msra.mxu0 0.0
        %846 = vmatprep.subr.mxu0 0.0
        %847 = vmatpush1.msra.mxu0 0.0
        %848 = vmatprep.subr.mxu0 0.0
        %849 = vmatpush1.msra.mxu0 0.0
        %850 = vmatprep.subr.mxu0 0.0
        %851 = vmatpush1.msra.mxu0 0.0
        %852 = vmatprep.subr.mxu0 0.0
        %853 = vmatpush1.msra.mxu0 0.0
        %854 = vmatprep.subr.mxu0 0.0
        %855 = vmatpush1.msra.mxu0 0.0
        %856 = vmatprep.subr.mxu0 0.0
        %857 = vmatpush1.msra.mxu0 0.0
        %858 = vmatprep.subr.mxu0 0.0
        %859 = vmatpush1.msra.mxu0 0.0
        %860 = vmatprep.subr.mxu0 0.0
        %861 = vmatpush1.msra.mxu0 0.0
        %862 = vmatprep.subr.mxu0 0.0
        %863 = vmatpush1.msra.mxu0 0.0
        %864 = vmatprep.subr.mxu0 0.0
        %865 = vmatpush1.msra.mxu0 0.0
        %866 = vmatprep.subr.mxu0 0.0
        %867 = vmatpush1.msra.mxu0 0.0
        %868 = vmatprep.subr.mxu0 0.0
        %869 = vmatpush1.msra.mxu0 0.0
        %870 = vmatprep.subr.mxu0 0.0
        %871 = vmatpush1.msra.mxu0 0.0
        %872 = vmatprep.subr.mxu0 0.0
        %873 = vmatpush1.msra.mxu0 0.0
        %874 = vmatprep.subr.mxu0 0.0
        %875 = vmatpush1.msra.mxu0 0.0
        %876 = vmatprep.subr.mxu0 0.0
        %877 = vmatpush1.msra.mxu0 0.0
        %878 = vmatprep.subr.mxu0 0.0
        %879 = vmatpush1.msra.mxu0 0.0
        %880 = vmatprep.subr.mxu0 0.0
        %881 = vmatpush1.msra.mxu0 0.0
        %882 = vmatprep.mubr.f32.mxu0 0.0
        %883 = vmatmul.mubr.f32.gmra.mrb[0].mxu0 %v816
        %v884 = vpop.f32.mrb[0].mxu0
        %v885 = vadd.f32 0.0, %v884
        %v886 = vpop.f32.mrb[0].mxu0
        %887 = vdwg.mxu0
        %888 = vrot.lane.b32.xlu0 %v390, 104
        %v889 = vpop.permute.xlu0 %888
        %890 = vrot.lane.b32.xlu0 %v390, 72
        %v891 = vpop.permute.xlu0 %890
        %v892 = vsel %vm396, %v889, 0
        %v894 = vsel %vm396, %v891, 0
        %896 = vmatprep.subr.mxu0 0.0
        %897 = vmatpush1.xpose.msra.mxu0 %v894
        %898 = vmatprep.subr.mxu0 0.0
        %899 = vmatpush1.xpose.msra.mxu0 0.0
        %900 = vmatprep.subr.mxu0 0.0
        %901 = vmatpush1.xpose.msra.mxu0 0.0
        %902 = vmatprep.subr.mxu0 0.0
        %903 = vmatpush1.xpose.msra.mxu0 0.0
        %904 = vmatprep.subr.mxu0 0.0
        %905 = vmatpush1.xpose.msra.mxu0 0.0
        %906 = vmatprep.subr.mxu0 0.0
        %907 = vmatpush1.xpose.msra.mxu0 0.0
        %908 = vmatprep.subr.mxu0 0.0
        %909 = vmatpush1.xpose.msra.mxu0 0.0
        %910 = vmatprep.subr.mxu0 0.0
        %911 = vmatpush1.xpose.msra.mxu0 0.0
        %912 = vmatprep.subr.mxu0 0.0
        %913 = vmatpush1.xpose.msra.mxu0 0.0
        %914 = vmatprep.subr.mxu0 0.0
        %915 = vmatpush1.xpose.msra.mxu0 0.0
        %916 = vmatprep.subr.mxu0 0.0
        %917 = vmatpush1.xpose.msra.mxu0 0.0
        %918 = vmatprep.subr.mxu0 0.0
        %919 = vmatpush1.xpose.msra.mxu0 0.0
        %920 = vmatprep.subr.mxu0 0.0
        %921 = vmatpush1.xpose.msra.mxu0 0.0
        %922 = vmatprep.subr.mxu0 0.0
        %923 = vmatpush1.xpose.msra.mxu0 0.0
        %924 = vmatprep.subr.mxu0 0.0
        %925 = vmatpush1.xpose.msra.mxu0 0.0
        %926 = vmatprep.subr.mxu0 0.0
        %927 = vmatpush1.xpose.msra.mxu0 0.0
        %928 = vmatprep.subr.mxu0 0.0
        %929 = vmatpush1.xpose.msra.mxu0 0.0
        %930 = vmatprep.subr.mxu0 0.0
        %931 = vmatpush1.xpose.msra.mxu0 0.0
        %932 = vmatprep.subr.mxu0 0.0
        %933 = vmatpush1.xpose.msra.mxu0 0.0
        %934 = vmatprep.subr.mxu0 0.0
        %935 = vmatpush1.xpose.msra.mxu0 0.0
        %936 = vmatprep.subr.mxu0 0.0
        %937 = vmatpush1.xpose.msra.mxu0 0.0
        %938 = vmatprep.subr.mxu0 0.0
        %939 = vmatpush1.xpose.msra.mxu0 0.0
        %940 = vmatprep.subr.mxu0 0.0
        %941 = vmatpush1.xpose.msra.mxu0 0.0
        %942 = vmatprep.subr.mxu0 0.0
        %943 = vmatpush1.xpose.msra.mxu0 0.0
        %944 = vmatprep.subr.mxu0 0.0
        %945 = vmatpush1.xpose.msra.mxu0 0.0
        %946 = vmatprep.subr.mxu0 0.0
        %947 = vmatpush1.xpose.msra.mxu0 0.0
        %948 = vmatprep.subr.mxu0 0.0
        %949 = vmatpush1.xpose.msra.mxu0 0.0
        %950 = vmatprep.subr.mxu0 0.0
        %951 = vmatpush1.xpose.msra.mxu0 0.0
        %952 = vmatprep.subr.mxu0 0.0
        %953 = vmatpush1.xpose.msra.mxu0 0.0
        %954 = vmatprep.subr.mxu0 0.0
        %955 = vmatpush1.xpose.msra.mxu0 0.0
        %956 = vmatprep.subr.mxu0 0.0
        %957 = vmatpush1.xpose.msra.mxu0 0.0
        %958 = vmatprep.subr.mxu0 0.0
        %959 = vmatpush1.xpose.msra.mxu0 0.0
        %960 = vmatprep.mubr.f32.mxu0 0.0
        %961 = vmatmul.mubr.f32.gmra.mrb[0].mxu0 %v892
        %v962 = vpop.f32.mrb[0].mxu0
        %v963 = vadd.f32 0.0, %v962
        %v964 = vpop.f32.mrb[0].mxu0
        %965 = vdwg.mxu0
        %v966 = vsel %vm396, %v963, -inf
        %967 = vmax.xlane.f32.xlu0 %v966
        %v968 = vpop.xlane.xlu0 %967
        %v969 = vsub.f32 %v963, %v968
        %v970 = vmul.f32 %v969, 1.442695
        %v971 = vpow.pop %v970
        %v972 = vsel %vm396, %v971, 0.0
        %973 = vadd.xlane.f32.xlu0 %v972
        %v974 = vpop.xlane.xlu0 %973
        %v975 = vrcp.pop %v974
        %v976 = vmul.f32 %v971, %v975
        %977 = vrot.lane.b32.xlu0 %v390, 40
        %v978 = vpop.permute.xlu0 %977
        %v981 = vsel %vm396, %v976, 0
        %983 = vmatprep.subr.mxu0 0.0
        %984 = vmatpush1.msra.mxu0 %v978
        %985 = vmatprep.subr.mxu0 0.0
        %986 = vmatpush1.msra.mxu0 0.0
        %987 = vmatprep.subr.mxu0 0.0
        %988 = vmatpush1.msra.mxu0 0.0
        %989 = vmatprep.subr.mxu0 0.0
        %990 = vmatpush1.msra.mxu0 0.0
        %991 = vmatprep.subr.mxu0 0.0
        %992 = vmatpush1.msra.mxu0 0.0
        %993 = vmatprep.subr.mxu0 0.0
        %994 = vmatpush1.msra.mxu0 0.0
        %995 = vmatprep.subr.mxu0 0.0
        %996 = vmatpush1.msra.mxu0 0.0
        %997 = vmatprep.subr.mxu0 0.0
        %998 = vmatpush1.msra.mxu0 0.0
        %999 = vmatprep.subr.mxu0 0.0
        %1000 = vmatpush1.msra.mxu0 0.0
        %1001 = vmatprep.subr.mxu0 0.0
        %1002 = vmatpush1.msra.mxu0 0.0
        %1003 = vmatprep.subr.mxu0 0.0
        %1004 = vmatpush1.msra.mxu0 0.0
        %1005 = vmatprep.subr.mxu0 0.0
        %1006 = vmatpush1.msra.mxu0 0.0
        %1007 = vmatprep.subr.mxu0 0.0
        %1008 = vmatpush1.msra.mxu0 0.0
        %1009 = vmatprep.subr.mxu0 0.0
        %1010 = vmatpush1.msra.mxu0 0.0
        %1011 = vmatprep.subr.mxu0 0.0
        %1012 = vmatpush1.msra.mxu0 0.0
        %1013 = vmatprep.subr.mxu0 0.0
        %1014 = vmatpush1.msra.mxu0 0.0
        %1015 = vmatprep.subr.mxu0 0.0
        %1016 = vmatpush1.msra.mxu0 0.0
        %1017 = vmatprep.subr.mxu0 0.0
        %1018 = vmatpush1.msra.mxu0 0.0
        %1019 = vmatprep.subr.mxu0 0.0
        %1020 = vmatpush1.msra.mxu0 0.0
        %1021 = vmatprep.subr.mxu0 0.0
        %1022 = vmatpush1.msra.mxu0 0.0
        %1023 = vmatprep.subr.mxu0 0.0
        %1024 = vmatpush1.msra.mxu0 0.0
        %1025 = vmatprep.subr.mxu0 0.0
        %1026 = vmatpush1.msra.mxu0 0.0
        %1027 = vmatprep.subr.mxu0 0.0
        %1028 = vmatpush1.msra.mxu0 0.0
        %1029 = vmatprep.subr.mxu0 0.0
        %1030 = vmatpush1.msra.mxu0 0.0
        %1031 = vmatprep.subr.mxu0 0.0
        %1032 = vmatpush1.msra.mxu0 0.0
        %1033 = vmatprep.subr.mxu0 0.0
        %1034 = vmatpush1.msra.mxu0 0.0
        %1035 = vmatprep.subr.mxu0 0.0
        %1036 = vmatpush1.msra.mxu0 0.0
        %1037 = vmatprep.subr.mxu0 0.0
        %1038 = vmatpush1.msra.mxu0 0.0
        %1039 = vmatprep.subr.mxu0 0.0
        %1040 = vmatpush1.msra.mxu0 0.0
        %1041 = vmatprep.subr.mxu0 0.0
        %1042 = vmatpush1.msra.mxu0 0.0
        %1043 = vmatprep.subr.mxu0 0.0
        %1044 = vmatpush1.msra.mxu0 0.0
        %1045 = vmatprep.subr.mxu0 0.0
        %1046 = vmatpush1.msra.mxu0 0.0
        %1047 = vmatprep.mubr.f32.mxu0 0.0
        %1048 = vmatmul.mubr.f32.gmra.mrb[0].mxu0 %v981
        %v1049 = vpop.f32.mrb[0].mxu0
        %v1050 = vadd.f32 0.0, %v1049
        %v1051 = vpop.f32.mrb[0].mxu0
        %1052 = vdwg.mxu0
        %1054 = vrot.lane.b32.xlu0 %v720, 8
        %v1055 = vpop.permute.xlu0 %1054
        %1058 = vrot.lane.b32.xlu0 %v885, 16
        %v1059 = vpop.permute.xlu0 %1058
        %1062 = vrot.lane.b32.xlu0 %v1050, 24
        %v1063 = vpop.permute.xlu0 %1062
        %v1065 = vsel %vm396, %v555, %v1055
        %vm1066 = vcmask 130048
        %v1067 = vsel %vm1066, %v1065, %v1059
        %vm1068 = vcmask 195584
        %v1069 = vsel %vm1068, %v1067, %v1063
        %v1070 = vld [vmem:[%s2] sm:$0xff]
        %v1071 = vld [vmem:[%s2 + $0x8] sm:$0xff]
        %v1072 = vld [vmem:[%s2 + $0x10] sm:$0xff]
        %v1073 = vld [vmem:[%s2 + $0x18] sm:$0xff]
        %v1074 = vlaneseq
        %v1075 = vshrl.u32 %v1074, 7
        %v1076 = vsub.s32 0, %v1075
        %v1077 = vrot.slane %v281, %v1076
        %v1079 = vsel %vm287, %v1069, 0
        %1081 = vmatprep.subr.mxu0 0.0
        %1082 = vmatpush1.msra.mxu0 %v1070
        %1083 = vmatprep.subr.mxu0 0.0
        %1084 = vmatpush1.msra.mxu0 %v1071
        %1085 = vmatprep.subr.mxu0 0.0
        %1086 = vmatpush1.msra.mxu0 %v1072
        %1087 = vmatprep.subr.mxu0 0.0
        %1088 = vmatpush1.msra.mxu0 %v1073
        %1089 = vmatprep.subr.mxu0 0.0
        %1090 = vmatpush1.msra.mxu0 0.0
        %1091 = vmatprep.subr.mxu0 0.0
        %1092 = vmatpush1.msra.mxu0 0.0
        %1093 = vmatprep.subr.mxu0 0.0
        %1094 = vmatpush1.msra.mxu0 0.0
        %1095 = vmatprep.subr.mxu0 0.0
        %1096 = vmatpush1.msra.mxu0 0.0
        %1097 = vmatprep.subr.mxu0 0.0
        %1098 = vmatpush1.msra.mxu0 0.0
        %1099 = vmatprep.subr.mxu0 0.0
        %1100 = vmatpush1.msra.mxu0 0.0
        %1101 = vmatprep.subr.mxu0 0.0
        %1102 = vmatpush1.msra.mxu0 0.0
        %1103 = vmatprep.subr.mxu0 0.0
        %1104 = vmatpush1.msra.mxu0 0.0
        %1105 = vmatprep.subr.mxu0 0.0
        %1106 = vmatpush1.msra.mxu0 0.0
        %1107 = vmatprep.subr.mxu0 0.0
        %1108 = vmatpush1.msra.mxu0 0.0
        %1109 = vmatprep.subr.mxu0 0.0
        %1110 = vmatpush1.msra.mxu0 0.0
        %1111 = vmatprep.subr.mxu0 0.0
        %1112 = vmatpush1.msra.mxu0 0.0
        %1113 = vmatprep.subr.mxu0 0.0
        %1114 = vmatpush1.msra.mxu0 0.0
        %1115 = vmatprep.subr.mxu0 0.0
        %1116 = vmatpush1.msra.mxu0 0.0
        %1117 = vmatprep.subr.mxu0 0.0
        %1118 = vmatpush1.msra.mxu0 0.0
        %1119 = vmatprep.subr.mxu0 0.0
        %1120 = vmatpush1.msra.mxu0 0.0
        %1121 = vmatprep.subr.mxu0 0.0
        %1122 = vmatpush1.msra.mxu0 0.0
        %1123 = vmatprep.subr.mxu0 0.0
        %1124 = vmatpush1.msra.mxu0 0.0
        %1125 = vmatprep.subr.mxu0 0.0
        %1126 = vmatpush1.msra.mxu0 0.0
        %1127 = vmatprep.subr.mxu0 0.0
        %1128 = vmatpush1.msra.mxu0 0.0
        %1129 = vmatprep.subr.mxu0 0.0
        %1130 = vmatpush1.msra.mxu0 0.0
        %1131 = vmatprep.subr.mxu0 0.0
        %1132 = vmatpush1.msra.mxu0 0.0
        %1133 = vmatprep.subr.mxu0 0.0
        %1134 = vmatpush1.msra.mxu0 0.0
        %1135 = vmatprep.subr.mxu0 0.0
        %1136 = vmatpush1.msra.mxu0 0.0
        %1137 = vmatprep.subr.mxu0 0.0
        %1138 = vmatpush1.msra.mxu0 0.0
        %1139 = vmatprep.subr.mxu0 0.0
        %1140 = vmatpush1.msra.mxu0 0.0
        %1141 = vmatprep.subr.mxu0 0.0
        %1142 = vmatpush1.msra.mxu0 0.0
        %1143 = vmatprep.subr.mxu0 0.0
        %1144 = vmatpush1.msra.mxu0 0.0
        %1145 = vmatprep.mubr.f32.mxu0 0.0
        %1146 = vmatmul.mubr.f32.gmra.mrb[0].mxu0 %v1079
        %v1147 = vpop.f32.mrb[0].mxu0
        %v1148 = vadd.f32 %v1077, %v1147
        %v1149 = vpop.f32.mrb[0].mxu0
        %1150 = vdwg.mxu0
        %v1151 = vadd.f32 %v311, %v1148
        %v1152 = vsel %vm287, %v1151, 0.0
        %1153 = vadd.xlane.f32.xlu0 %v1152
        %v1154 = vpop.xlane.xlu0 %1153
        %v1155 = vmul.f32 %v1154, %v291
        %v1156 = vsub.f32 %v1151, %v1155
        %v1157 = vmul.f32 %v1156, %v1156
        %v1158 = vsel %vm287, %v1157, 0.0
        %1159 = vadd.xlane.f32.xlu0 %v1158
        %v1160 = vpop.xlane.xlu0 %1159
        %v1161 = vmul.f32 %v1160, %v291
        %v1162 = vadd.f32 %v1161, 1e-05
        %v1163 = vrsqrt.pop %v1162
        %v1164 = vmul.f32 %v1156, %v1163
        %v1165 = vlaneseq
        %v1166 = vshrl.u32 %v1165, 7
        %v1167 = vsub.s32 0, %v1166
        %v1168 = vrot.slane %v277, %v1167
        %v1169 = vmul.f32 %v1164, %v1168
        %v1170 = vlaneseq
        %v1171 = vshrl.u32 %v1170, 7
        %v1172 = vsub.s32 0, %v1171
        %v1173 = vrot.slane %v278, %v1172
        %v1174 = vadd.f32 %v1169, %v1173
        %v1175 = vld [vmem:[%s3] sm:$0xff]
        %v1176 = vld [vmem:[%s3 + $0x8] sm:$0xff]
        %v1177 = vld [vmem:[%s3 + $0x10] sm:$0xff]
        %v1178 = vld [vmem:[%s3 + $0x18] sm:$0xff]
        %v1179 = vlaneseq
        %v1180 = vshrl.u32 %v1179, 7
        %v1181 = vsub.s32 0, %v1180
        %v1182 = vrot.slane %v285, %v1181
        %v1184 = vsel %vm287, %v1174, 0
        %1186 = vmatprep.subr.mxu0 0.0
        %1187 = vmatpush1.msra.mxu0 %v1175
        %1188 = vmatprep.subr.mxu0 0.0
        %1189 = vmatpush1.msra.mxu0 %v1176
        %1190 = vmatprep.subr.mxu0 0.0
        %1191 = vmatpush1.msra.mxu0 %v1177
        %1192 = vmatprep.subr.mxu0 0.0
        %1193 = vmatpush1.msra.mxu0 %v1178
        %1194 = vmatprep.subr.mxu0 0.0
        %1195 = vmatpush1.msra.mxu0 0.0
        %1196 = vmatprep.subr.mxu0 0.0
        %1197 = vmatpush1.msra.mxu0 0.0
        %1198 = vmatprep.subr.mxu0 0.0
        %1199 = vmatpush1.msra.mxu0 0.0
        %1200 = vmatprep.subr.mxu0 0.0
        %1201 = vmatpush1.msra.mxu0 0.0
        %1202 = vmatprep.subr.mxu0 0.0
        %1203 = vmatpush1.msra.mxu0 0.0
        %1204 = vmatprep.subr.mxu0 0.0
        %1205 = vmatpush1.msra.mxu0 0.0
        %1206 = vmatprep.subr.mxu0 0.0
        %1207 = vmatpush1.msra.mxu0 0.0
        %1208 = vmatprep.subr.mxu0 0.0
        %1209 = vmatpush1.msra.mxu0 0.0
        %1210 = vmatprep.subr.mxu0 0.0
        %1211 = vmatpush1.msra.mxu0 0.0
        %1212 = vmatprep.subr.mxu0 0.0
        %1213 = vmatpush1.msra.mxu0 0.0
        %1214 = vmatprep.subr.mxu0 0.0
        %1215 = vmatpush1.msra.mxu0 0.0
        %1216 = vmatprep.subr.mxu0 0.0
        %1217 = vmatpush1.msra.mxu0 0.0
        %1218 = vmatprep.subr.mxu0 0.0
        %1219 = vmatpush1.msra.mxu0 0.0
        %1220 = vmatprep.subr.mxu0 0.0
        %1221 = vmatpush1.msra.mxu0 0.0
        %1222 = vmatprep.subr.mxu0 0.0
        %1223 = vmatpush1.msra.mxu0 0.0
        %1224 = vmatprep.subr.mxu0 0.0
        %1225 = vmatpush1.msra.mxu0 0.0
        %1226 = vmatprep.subr.mxu0 0.0
        %1227 = vmatpush1.msra.mxu0 0.0
        %1228 = vmatprep.subr.mxu0 0.0
        %1229 = vmatpush1.msra.mxu0 0.0
        %1230 = vmatprep.subr.mxu0 0.0
        %1231 = vmatpush1.msra.mxu0 0.0
        %1232 = vmatprep.subr.mxu0 0.0
        %1233 = vmatpush1.msra.mxu0 0.0
        %1234 = vmatprep.subr.mxu0 0.0
        %1235 = vmatpush1.msra.mxu0 0.0
        %1236 = vmatprep.subr.mxu0 0.0
        %1237 = vmatpush1.msra.mxu0 0.0
        %1238 = vmatprep.subr.mxu0 0.0
        %1239 = vmatpush1.msra.mxu0 0.0
        %1240 = vmatprep.subr.mxu0 0.0
        %1241 = vmatpush1.msra.mxu0 0.0
        %1242 = vmatprep.subr.mxu0 0.0
        %1243 = vmatpush1.msra.mxu0 0.0
        %1244 = vmatprep.subr.mxu0 0.0
        %1245 = vmatpush1.msra.mxu0 0.0
        %1246 = vmatprep.subr.mxu0 0.0
        %1247 = vmatpush1.msra.mxu0 0.0
        %1248 = vmatprep.subr.mxu0 0.0
        %1249 = vmatpush1.msra.mxu0 0.0
        %1250 = vmatprep.mubr.f32.mxu0 0.0
        %1251 = vmatmul.mubr.f32.gmra.mrb[0].mxu0 %v1184
        %v1252 = vpop.f32.mrb[0].mxu0
        %v1253 = vadd.f32 %v1182, %v1252
        %v1254 = vpop.f32.mrb[0].mxu0
        %1255 = vdwg.mxu0
        %1256 = vadd.xlane.f32.xlu0 %v1253
        %v1257 = vpop.xlane.xlu0 %1256
        %v1258 = vrcp.pop 128.0
        %v1259 = vmul.f32 %v1257, %v1258
        %v1260 = vsub.f32 %v1253, %v1259
        %v1261 = vmul.f32 %v1260, %v1260
        %1262 = vadd.xlane.f32.xlu0 %v1261
        %v1263 = vpop.xlane.xlu0 %1262
        %v1264 = vmul.f32 %v1263, %v1258
        %v1265 = vadd.f32 %v1264, 1e-05
        %v1266 = vrsqrt.pop %v1265
        %v1267 = vmul.f32 %v1260, %v1266
        %v1268 = vlaneseq
        %v1269 = vshrl.u32 %v1268, 7
        %v1270 = vsub.s32 0, %v1269
        %v1271 = vrot.slane %v283, %v1270
        %v1272 = vmul.f32 %v1267, %v1271
        %v1273 = vlaneseq
        %v1274 = vshrl.u32 %v1273, 7
        %v1275 = vsub.s32 0, %v1274
        %v1276 = vrot.slane %v284, %v1275
        %v1277 = vadd.f32 %v1272, %v1276
        %v1278 = vmul.f32 %v1277, 0.5
        %v1279 = vmul.f32 %v1277, 0.70710677
        %v1280 = verf.f32.pop %v1279
        %v1281 = vadd.f32 %v1280, 1.0
        %v1282 = vmul.f32 %v1278, %v1281
        %v1283 = vld [vmem:[%s4] sm:$0xff]
        %v1284 = vld [vmem:[%s4 + $0x8] sm:$0xff]
        %v1285 = vld [vmem:[%s4 + $0x10] sm:$0xff]
        %v1286 = vld [vmem:[%s4 + $0x18] sm:$0xff]
        %v1287 = vld [vmem:[%s4 + $0x20] sm:$0xff]
        %v1288 = vld [vmem:[%s4 + $0x28] sm:$0xff]
        %v1289 = vld [vmem:[%s4 + $0x30] sm:$0xff]
        %v1290 = vld [vmem:[%s4 + $0x38] sm:$0xff]
        %v1291 = vld [vmem:[%s4 + $0x40] sm:$0xff]
        %v1292 = vld [vmem:[%s4 + $0x48] sm:$0xff]
        %v1293 = vld [vmem:[%s4 + $0x50] sm:$0xff]
        %v1294 = vld [vmem:[%s4 + $0x58] sm:$0xff]
        %v1295 = vld [vmem:[%s4 + $0x60] sm:$0xff]
        %v1296 = vld [vmem:[%s4 + $0x68] sm:$0xff]
        %v1297 = vld [vmem:[%s4 + $0x70] sm:$0xff]
        %v1298 = vld [vmem:[%s4 + $0x78] sm:$0xff]
        %v1299 = vlaneseq
        %v1300 = vshrl.u32 %v1299, 7
        %v1301 = vsub.s32 0, %v1300
        %v1302 = vrot.slane %v282, %v1301
        %1303 = vmatprep.subr.mxu0 0.0
        %1304 = vmatpush1.msra.mxu0 %v1283
        %1305 = vmatprep.subr.mxu0 0.0
        %1306 = vmatpush1.msra.mxu0 %v1284
        %1307 = vmatprep.subr.mxu0 0.0
        %1308 = vmatpush1.msra.mxu0 %v1285
        %1309 = vmatprep.subr.mxu0 0.0
        %1310 = vmatpush1.msra.mxu0 %v1286
        %1311 = vmatprep.subr.mxu0 0.0
        %1312 = vmatpush1.msra.mxu0 %v1287
        %1313 = vmatprep.subr.mxu0 0.0
        %1314 = vmatpush1.msra.mxu0 %v1288
        %1315 = vmatprep.subr.mxu0 0.0
        %1316 = vmatpush1.msra.mxu0 %v1289
        %1317 = vmatprep.subr.mxu0 0.0
        %1318 = vmatpush1.msra.mxu0 %v1290
        %1319 = vmatprep.subr.mxu0 0.0
        %1320 = vmatpush1.msra.mxu0 %v1291
        %1321 = vmatprep.subr.mxu0 0.0
        %1322 = vmatpush1.msra.mxu0 %v1292
        %1323 = vmatprep.subr.mxu0 0.0
        %1324 = vmatpush1.msra.mxu0 %v1293
        %1325 = vmatprep.subr.mxu0 0.0
        %1326 = vmatpush1.msra.mxu0 %v1294
        %1327 = vmatprep.subr.mxu0 0.0
        %1328 = vmatpush1.msra.mxu0 %v1295
        %1329 = vmatprep.subr.mxu0 0.0
        %1330 = vmatpush1.msra.mxu0 %v1296
        %1331 = vmatprep.subr.mxu0 0.0
        %1332 = vmatpush1.msra.mxu0 %v1297
        %1333 = vmatprep.subr.mxu0 0.0
        %1334 = vmatpush1.msra.mxu0 %v1298
        %1335 = vmatprep.subr.mxu0 0.0
        %1336 = vmatpush1.msra.mxu0 0.0
        %1337 = vmatprep.subr.mxu0 0.0
        %1338 = vmatpush1.msra.mxu0 0.0
        %1339 = vmatprep.subr.mxu0 0.0
        %1340 = vmatpush1.msra.mxu0 0.0
        %1341 = vmatprep.subr.mxu0 0.0
        %1342 = vmatpush1.msra.mxu0 0.0
        %1343 = vmatprep.subr.mxu0 0.0
        %1344 = vmatpush1.msra.mxu0 0.0
        %1345 = vmatprep.subr.mxu0 0.0
        %1346 = vmatpush1.msra.mxu0 0.0
        %1347 = vmatprep.subr.mxu0 0.0
        %1348 = vmatpush1.msra.mxu0 0.0
        %1349 = vmatprep.subr.mxu0 0.0
        %1350 = vmatpush1.msra.mxu0 0.0
        %1351 = vmatprep.subr.mxu0 0.0
        %1352 = vmatpush1.msra.mxu0 0.0
        %1353 = vmatprep.subr.mxu0 0.0
        %1354 = vmatpush1.msra.mxu0 0.0
        %1355 = vmatprep.subr.mxu0 0.0
        %1356 = vmatpush1.msra.mxu0 0.0
        %1357 = vmatprep.subr.mxu0 0.0
        %1358 = vmatpush1.msra.mxu0 0.0
        %1359 = vmatprep.subr.mxu0 0.0
        %1360 = vmatpush1.msra.mxu0 0.0
        %1361 = vmatprep.subr.mxu0 0.0
        %1362 = vmatpush1.msra.mxu0 0.0
        %1363 = vmatprep.subr.mxu0 0.0
        %1364 = vmatpush1.msra.mxu0 0.0
        %1365 = vmatprep.subr.mxu0 0.0
        %1366 = vmatpush1.msra.mxu0 0.0
        %1367 = vmatprep.mubr.f32.mxu0 0.0
        %1368 = vmatmul.mubr.f32.gmra.mrb[0].mxu0 %v1282
        %v1369 = vpop.f32.mrb[0].mxu0
        %v1370 = vadd.f32 %v1302, %v1369
        %v1371 = vpop.f32.mrb[0].mxu0
        %1372 = vdwg.mxu0
        %v1373 = vadd.f32 %v1174, %v1370
        %v1374 = vsel %vm287, %v1373, 0.0
        %1375 = vadd.xlane.f32.xlu0 %v1374
        %v1376 = vpop.xlane.xlu0 %1375
        %v1377 = vmul.f32 %v1376, %v291
        %v1378 = vsub.f32 %v1373, %v1377
        %v1379 = vmul.f32 %v1378, %v1378
        %v1380 = vsel %vm287, %v1379, 0.0
        %1381 = vadd.xlane.f32.xlu0 %v1380
        %v1382 = vpop.xlane.xlu0 %1381
        %v1383 = vmul.f32 %v1382, %v291
        %v1384 = vadd.f32 %v1383, 1e-05
        %v1385 = vrsqrt.pop %v1384
        %v1386 = vmul.f32 %v1378, %v1385
        %v1387 = vlaneseq
        %v1388 = vshrl.u32 %v1387, 7
        %v1389 = vsub.s32 0, %v1388
        %v1390 = vrot.slane %v279, %v1389
        %v1391 = vmul.f32 %v1386, %v1390
        %v1392 = vlaneseq
        %v1393 = vshrl.u32 %v1392, 7
        %v1394 = vsub.s32 0, %v1393
        %v1395 = vrot.slane %v280, %v1394
        %v1396 = vadd.f32 %v1391, %v1395
        %1397 = vst.msk [vmem:[%s269] sm:$0xff] %vm287, %v1396
        %s1398 = sand.u32 %s181, 1
        %s1399 = scalar_lea.sflag [#allocation3], %s1398
        %s1400 = sand.u32 %s181, 1
        %s1401 = smul.addr %s1400, 8
        %s1402 = scalar_lea.vmem [#allocation2], %s1401
        // Predicated region
        $region49: #{tpu_custom_call.1} parent=47 // pred_check
          %p1403 = pneg %p191
        $region50: #{tpu_custom_call.1} parent=47 // pred_check_branch
          %1405 = sbr.rel (%p1403) target = $region52
        $region51: #{tpu_custom_call.1} parent=47 // pred_region
          %s1407 = ssub.s32 128, 128
          %1408 = vsyncadd %s1399, %s1407
          %s1409 = smul.addr %s21, 128
          %s1410 = scalar_lea.hbm %s7, %s1409
          %s1412 = sshll.u32 %s1402, 4
          %s1413 = int_to_ptr.vmem [resolvable:$true] %s1412
          %1415 = dma.vmem_to_hbm [thread:$0]  %s1413, 128, %s1410, %s1399
        $region52: #{tpu_custom_call.1} parent=47 // pred_fallthru
          _
      $region48: #{tpu_custom_call.1} parent=5 // pred_fallthru
        _
      %p1416 = scmp.le.s32.totalorder 2, %s16
      // Predicated region
      $region53: #{tpu_custom_call.1} parent=5 // pred_check
        %p1417 = pneg %p1416
      $region54: #{tpu_custom_call.1} parent=5 // pred_check_branch
        %1419 = sbr.rel (%p1417) target = $region56
      $region55: #{tpu_custom_call.1} parent=5 // pred_region
        %s1420 = ssub.s32 %s16, 2
        // Predicated region
        $region57: #{tpu_custom_call.1} parent=55 // pred_check
          %p1421 = pneg %p197
        $region58: #{tpu_custom_call.1} parent=55 // pred_check_branch
          %1423 = sbr.rel (%p1421) target = $region60
        $region59: #{tpu_custom_call.1} parent=55 // pred_region
          %s1424 = sand.u32 %s182, 1
          %s1425 = scalar_lea.sflag [#allocation3], %s1424
          %s1426 = sand.u32 %s182, 1
          %s1427 = smul.addr %s1426, 8
          %s1428 = scalar_lea.vmem [#allocation2], %s1427
          %1429 = dma.done %s1425, 128
        $region60: #{tpu_custom_call.1} parent=55 // pred_fallthru
          _
      $region56: #{tpu_custom_call.1} parent=5 // pred_fallthru
        _
    $region6: #{tpu_custom_call.1} parent=1 // loop_footer
      %s20 = sadd.s32 1, %s16
    $region7: #{tpu_custom_call.1} parent=1 // loop_footer_branch
      %15 = sbr.rel target = $region3
    $region8: #{tpu_custom_call.1} parent=1 // loop_exit
      _
    %1430 = vsyncpa [#allocation3], 1
    %s1431 = scalar_lea.sflag [#allocation3], 1
    %1432 = vsyncpa %s1431, 1

</llo_original>
